<compile_context>
chip_gen: v5e
topology: v5e:2x2
jax: 0.10.0
libtpu: 0.0.40
codegen_flags: <defaults>
</compile_context>

<pallas_src>
import math
import jax
import jax.numpy as jnp
from jax.experimental import pallas as pl
from jax.experimental.pallas import tpu as pltpu


def simple_rnn_time_aware(inputs, w_packed, *, hidden_size, label_len=4, t_chunk=8):
    """inputs: (B, T, input_size + 1), batch-first; last feature column is delta_time.
    w_packed: (K_pad, 5H) bf16 packed weight, rows = [x | h | c | bias | pad],
    cols = [f, i, o, g, cd].  Returns (B, label_len, H)."""
    B, T, Dp1 = inputs.shape
    D = Dp1 - 1
    H = hidden_size
    K_pad = w_packed.shape[0]
    ones_col = D + 2 * H

    assert T % t_chunk == 0, "T must be a multiple of t_chunk"
    assert label_len <= T
    b_blk = 8 if (B % 8 == 0 and B >= 8) else B
    assert B % b_blk == 0
    nb = B // b_blk
    nc = T // t_chunk

    # Time-major single stream (x and delta_t stay together; split inside kernel).
    seq = jnp.transpose(inputs, (1, 0, 2))          # (T, B, D+1) f32

    def kernel(seq_ref, w_ref, out_ref, lhs_ref, c_ref):
        chunk = pl.program_id(1)

        # ---- init carried state at the start of each batch-block's time sweep
        @pl.when(chunk == 0)
        def _():
            lhs_ref[...] = jnp.zeros_like(lhs_ref)          # [x|h|c|1|pad] GEMM LHS
            lhs_ref[:, ones_col:ones_col + 1] = jnp.ones((b_blk, 1), dtype=lhs_ref.dtype)
            c_ref[...] = jnp.zeros_like(c_ref)              # cell state c (f32)
            out_ref[...] = jnp.zeros_like(out_ref)          # defensive init (resident)

        # Weights stay in vregs across the unrolled chunk (loop-invariant).
        w = w_ref[...]

        def step(tl, carry):
            xdt = seq_ref[tl]                                # (b_blk, D+1) f32
            x = xdt[:, :D]
            dt = xdt[:, D:]

            # place current x_t into the fused LHS (h/c parts hold step t-1 state)
            lhs_ref[:, :D] = x.astype(lhs_ref.dtype)

            # single fused GEMM: [x|h|c|1] @ [wx;wh;0 | 0;0;wcd | bx;bcd] -> (b_blk, 5H)
            acts = jnp.dot(lhs_ref[...], w, preferred_element_type=jnp.float32)

            # fused transcendentals over contiguous lane blocks
            sig = jax.nn.sigmoid(acts[:, :3 * H])            # [f | i | o]
            tnh = jnp.tanh(acts[:, 3 * H:5 * H])             # [g | c_short]
            f = sig[:, 0 * H:1 * H]
            i = sig[:, 1 * H:2 * H]
            o = sig[:, 2 * H:3 * H]
            g = tnh[:, 0 * H:1 * H]
            c_short = tnh[:, 1 * H:2 * H]

            # time-aware cell decomposition (elementwise in f32)
            c = c_ref[...]
            time_scale = pl.reciprocal(dt + 1.0, approx=True)    # EUP slot
            c_adjusted = (c - c_short) + c_short * time_scale
            c_new = f * c_adjusted + i * g
            h_new = o * jnp.tanh(c_new)

            # carry state for the next step
            c_ref[...] = c_new
            lhs_ref[:, D:D + H] = h_new.astype(lhs_ref.dtype)
            lhs_ref[:, D + H:D + 2 * H] = c_new.astype(lhs_ref.dtype)

            # emit only the last label_len hidden states
            t_glob = chunk * t_chunk + tl

            @pl.when(t_glob >= T - label_len)
            def _():
                idx = jnp.maximum(t_glob - (T - label_len), 0)
                out_ref[idx] = h_new

            return carry

        jax.lax.fori_loop(0, t_chunk, step, None, unroll=True)

    grid_spec = pltpu.PrefetchScalarGridSpec(
        num_scalar_prefetch=0,
        grid=(nb, nc),
        in_specs=[
            pl.BlockSpec((t_chunk, b_blk, Dp1), lambda b, c: (c, b, 0)),   # input chunk
            pl.BlockSpec((K_pad, 5 * H), lambda b, c: (0, 0)),             # resident weights
        ],
        # Constant time-index -> output block stays resident across the whole sweep.
        out_specs=pl.BlockSpec((label_len, b_blk, H), lambda b, c: (0, b, 0)),
        scratch_shapes=[
            pltpu.VMEM((b_blk, K_pad), jnp.bfloat16),   # persistent [x|h|c|1] GEMM LHS
            pltpu.VMEM((b_blk, H), jnp.float32),        # carried cell state c
        ],
    )

    h_last = pl.pallas_call(
        kernel,
        out_shape=jax.ShapeDtypeStruct((label_len, B, H), jnp.float32),
        grid_spec=grid_spec,
        compiler_params=pltpu.CompilerParams(
            # batch blocks independent (v7x megacore); time is a strict recurrence
            dimension_semantics=("parallel", "arbitrary"),
        ),
    )(seq, w_packed)

    return jnp.transpose(h_last, (1, 0, 2))      # (B, label_len, H)


def init_params(key, input_size, hidden_size):
    """Synthetic params matching TimeAwareCell layer shapes (torch Linear init):
      x{f,i,o,g}: Linear(input_size, H, bias=True)
      h{f,i,o,g}: Linear(H, H, bias=False)
      cd:         Linear(H, H, bias=True)
    Stored transposed ((in, out)), gate order [f, i, o, g]."""
    H = hidden_size
    ks = jax.random.split(key, 14)
    s_x = 1.0 / math.sqrt(input_size)
    s_h = 1.0 / math.sqrt(hidden_size)

    def u(k, shape, s):
        return jax.random.uniform(k, shape, jnp.float32, -s, s)

    wx = jnp.concatenate([u(ks[j], (input_size, H), s_x) for j in range(4)], axis=1)
    bx = jnp.concatenate([u(ks[4 + j], (1, H), s_x) for j in range(4)], axis=1)
    wh = jnp.concatenate([u(ks[8 + j], (H, H), s_h) for j in range(4)], axis=1)
    wcd = u(ks[12], (H, H), s_h)
    bcd = u(ks[13], (1, H), s_h)
    return {"wx": wx, "bx": bx, "wh": wh, "wcd": wcd, "bcd": bcd}


def pack_weights(raw, input_size, hidden_size):
    """Pack gate weights, cd weights and all biases into one bf16 (K_pad, 5H) RHS:
      rows [0:D)        = wx   -> cols [0:4H)
      rows [D:D+H)      = wh   -> cols [0:4H)
      rows [D+H:D+2H)   = wcd  -> cols [4H:5H)
      row   D+2H        = [bx | bcd]   (hit by the constant-1 LHS column)
      rows beyond       = zero padding to a multiple of 16 (bf16 sublane packing)."""
    D, H = input_size, hidden_size
    K = D + 2 * H + 1
    K_pad = -(-K // 16) * 16
    W = jnp.zeros((K_pad, 5 * H), jnp.float32)
    W = W.at[:D, :4 * H].set(raw["wx"])
    W = W.at[D:D + H, :4 * H].set(raw["wh"])
    W = W.at[D + H:D + 2 * H, 4 * H:].set(raw["wcd"])
    W = W.at[D + 2 * H, :4 * H].set(raw["bx"][0])
    W = W.at[D + 2 * H, 4 * H:].set(raw["bcd"][0])
    return W.astype(jnp.bfloat16)


def reference(inputs, raw, label_len):
    """Pure-JAX reference of SimpleRNN(TimeAware, long_time=False) for a full-length
    batch-first sequence.  Matmul operands cast to bf16 (f32 accumulate) like the
    kernel; biases stay f32 and the reciprocal is exact."""
    B, T, Dp1 = inputs.shape
    D = Dp1 - 1
    H = raw["wcd"].shape[0]
    wxh = jnp.concatenate([raw["wx"], raw["wh"]], axis=0).astype(jnp.bfloat16)
    wcd = raw["wcd"].astype(jnp.bfloat16)
    h = jnp.zeros((B, H), jnp.float32)
    c = jnp.zeros((B, H), jnp.float32)
    hs = []
    for t in range(T):
        x = inputs[:, t, :D]
        dt = inputs[:, t, D:]
        xh = jnp.concatenate([x, h], axis=-1).astype(jnp.bfloat16)
        gates = jnp.dot(xh, wxh, preferred_element_type=jnp.float32) + raw["bx"]
        f = jax.nn.sigmoid(gates[:, 0 * H:1 * H])
        i = jax.nn.sigmoid(gates[:, 1 * H:2 * H])
        o = jax.nn.sigmoid(gates[:, 2 * H:3 * H])
        g = jnp.tanh(gates[:, 3 * H:4 * H])
        c_short = jnp.tanh(jnp.dot(c.astype(jnp.bfloat16), wcd,
                                   preferred_element_type=jnp.float32) + raw["bcd"])
        c_adj = (c - c_short) + c_short * (1.0 / (dt + 1.0))
        c = f * c_adj + i * g
        h = o * jnp.tanh(c)
        hs.append(h)
    h_seq = jnp.stack(hs, axis=0)                       # (T, B, H)
    return jnp.transpose(h_seq[T - label_len:], (1, 0, 2))


if __name__ == "__main__":
    B, input_size, hidden_size, T, label_len = 16, 16, 32, 16, 4

    key = jax.random.PRNGKey(0)
    k_x, k_dt, k_p = jax.random.split(key, 3)

    x_feat = jax.random.normal(k_x, (B, T, input_size), jnp.float32)
    delta_t = jax.random.uniform(k_dt, (B, T, 1), jnp.float32, minval=0.0, maxval=5.0)
    inputs = jnp.concatenate([x_feat, delta_t], axis=-1)      # (B, T, input_size + 1)

    raw = init_params(k_p, input_size, hidden_size)
    w_packed = pack_weights(raw, input_size, hidden_size)

    h_out = simple_rnn_time_aware(inputs, w_packed, hidden_size=hidden_size,
                                  label_len=label_len, t_chunk=8)
    jax.block_until_ready(h_out)

    h_ref = reference(inputs, raw, label_len)
    assert h_out.shape == (B, label_len, hidden_size)
    # bf16 matmul operands / folded bf16 biases + approx reciprocal -> loose tolerance.
    assert jnp.max(jnp.abs(h_out - h_ref)) < 2e-2

    print("KERNEL_OK")
</pallas_src>

<mosaic_0001>
module attributes {stable_mosaic.version = 11 : i64} {
  func.func @kernel(%arg0: i32, %arg1: i32, %arg2: memref<8x8x17xf32, #tpu.memory_space<vmem>>, %arg3: memref<96x160xbf16, #tpu.memory_space<vmem>>, %arg4: memref<4x8x32xf32, #tpu.memory_space<vmem>>, %arg5: memref<8x96xbf16, #tpu.memory_space<vmem>>, %arg6: memref<8x32xf32, #tpu.memory_space<vmem>>) attributes {dimension_semantics = [#tpu.dimension_semantics<parallel>, #tpu.dimension_semantics<arbitrary>], iteration_bounds = array<i64: 2, 2>, scalar_prefetch = 0 : i64, scratch_operands = 2 : i64, tpu.core_type = #tpu.core_type<tc>, window_params = [{transform_indices = @transform_0, window_bounds = array<i64: 8, 8, 17>}, {pipeline_mode = #tpu.pipeline_mode<synchronous>, transform_indices = @transform_1, window_bounds = array<i64: 96, 160>}, {transform_indices = @transform_2, window_bounds = array<i64: 4, 8, 32>}]} {
    %c0_i32 = arith.constant 0 : i32
    %0 = arith.cmpi eq, %arg1, %c0_i32 : i32
    %1 = arith.extui %0 : i1 to i32
    %c0_i32_0 = arith.constant 0 : i32
    %2 = arith.cmpi ne, %1, %c0_i32_0 : i32
    scf.if %2 {
      %cst_159 = arith.constant 0.000000e+00 : bf16
      %364 = vector.broadcast %cst_159 : bf16 to vector<8x96xbf16>
      %c0_160 = arith.constant 0 : index
      %c0_161 = arith.constant 0 : index
      %365 = vector.load %arg5[%c0_160, %c0_161] : memref<8x96xbf16, #tpu.memory_space<vmem>>, vector<8x96xbf16>
      tpu.vector_store %arg5[%c0_160, %c0_161], %364 {strides = array<i32>} : memref<8x96xbf16, #tpu.memory_space<vmem>>, vector<8x96xbf16>,
      %cst_162 = arith.constant 1.000000e+00 : bf16
      %366 = vector.broadcast %cst_162 : bf16 to vector<8x1xbf16>
      %c0_163 = arith.constant 0 : index
      %c80 = arith.constant 80 : index
      %367 = vector.load %arg5[%c0_163, %c80] : memref<8x96xbf16, #tpu.memory_space<vmem>>, vector<8x1xbf16>
      tpu.vector_store %arg5[%c0_163, %c80], %366 {strides = array<i32>} : memref<8x96xbf16, #tpu.memory_space<vmem>>, vector<8x1xbf16>,
      %cst_164 = arith.constant 0.000000e+00 : f32
      %368 = vector.broadcast %cst_164 : f32 to vector<8x32xf32>
      %c0_165 = arith.constant 0 : index
      %c0_166 = arith.constant 0 : index
      %369 = vector.load %arg6[%c0_165, %c0_166] : memref<8x32xf32, #tpu.memory_space<vmem>>, vector<8x32xf32>
      tpu.vector_store %arg6[%c0_165, %c0_166], %368 {strides = array<i32>} : memref<8x32xf32, #tpu.memory_space<vmem>>, vector<8x32xf32>,
      %cst_167 = arith.constant 0.000000e+00 : f32
      %370 = vector.broadcast %cst_167 : f32 to vector<4x8x32xf32>
      %c0_168 = arith.constant 0 : index
      %c0_169 = arith.constant 0 : index
      %c0_170 = arith.constant 0 : index
      %371 = vector.load %arg4[%c0_168, %c0_169, %c0_170] : memref<4x8x32xf32, #tpu.memory_space<vmem>>, vector<4x8x32xf32>
      tpu.vector_store %arg4[%c0_168, %c0_169, %c0_170], %370 {strides = array<i32>} : memref<4x8x32xf32, #tpu.memory_space<vmem>>, vector<4x8x32xf32>,
    } else {
    }
    %c0 = arith.constant 0 : index
    %c0_1 = arith.constant 0 : index
    %3 = vector.load %arg3[%c0, %c0_1] : memref<96x160xbf16, #tpu.memory_space<vmem>>, vector<96x160xbf16>
    %c0_i32_2 = arith.constant 0 : i32
    %4 = arith.index_cast %c0_i32_2 : i32 to index
    %c0_3 = arith.constant 0 : index
    %c0_4 = arith.constant 0 : index
    %5 = vector.load %arg2[%4, %c0_3, %c0_4] : memref<8x8x17xf32, #tpu.memory_space<vmem>>, vector<1x8x17xf32>
    %6 = vector.shape_cast %5 : vector<1x8x17xf32> to vector<8x17xf32>
    %7 = vector.extract_strided_slice %6 {offsets = [0, 0], sizes = [8, 16], strides = [1, 1]} : vector<8x17xf32> to vector<8x16xf32>
    %8 = vector.extract_strided_slice %6 {offsets = [0, 16], sizes = [8, 1], strides = [1, 1]} : vector<8x17xf32> to vector<8x1xf32>
    %9 = arith.truncf %7 : vector<8x16xf32> to vector<8x16xbf16>
    %c0_5 = arith.constant 0 : index
    %c0_6 = arith.constant 0 : index
    %10 = vector.load %arg5[%c0_5, %c0_6] : memref<8x96xbf16, #tpu.memory_space<vmem>>, vector<8x16xbf16>
    tpu.vector_store %arg5[%c0_5, %c0_6], %9 {strides = array<i32>} : memref<8x96xbf16, #tpu.memory_space<vmem>>, vector<8x16xbf16>,
    %c0_7 = arith.constant 0 : index
    %c0_8 = arith.constant 0 : index
    %11 = vector.load %arg5[%c0_7, %c0_8] : memref<8x96xbf16, #tpu.memory_space<vmem>>, vector<8x96xbf16>
    %cst = arith.constant dense<0.000000e+00> : vector<8x160xf32>
    %12 = tpu.matmul %11, %3, %cst {dimension_numbers = #tpu.dot_dimension_numbers<[1], [0], [0], [1], [0, 0, 1, 1], [], []>} : vector<8x96xbf16>, vector<96x160xbf16>, vector<8x160xf32> -> vector<8x160xf32>
    %13 = vector.extract_strided_slice %12 {offsets = [0, 0], sizes = [8, 96], strides = [1, 1]} : vector<8x160xf32> to vector<8x96xf32>
    %14 = arith.negf %13 : vector<8x96xf32>
    %15 = math.exp %14 : vector<8x96xf32>
    %cst_9 = arith.constant 1.000000e+00 : f32
    %16 = vector.broadcast %cst_9 : f32 to vector<8x96xf32>
    %17 = arith.addf %16, %15 : vector<8x96xf32>
    %18 = arith.divf %16, %17 : vector<8x96xf32>
    %19 = vector.extract_strided_slice %12 {offsets = [0, 96], sizes = [8, 64], strides = [1, 1]} : vector<8x160xf32> to vector<8x64xf32>
    %20 = math.tanh %19 : vector<8x64xf32>
    %21 = vector.extract_strided_slice %18 {offsets = [0, 0], sizes = [8, 32], strides = [1, 1]} : vector<8x96xf32> to vector<8x32xf32>
    %22 = vector.extract_strided_slice %18 {offsets = [0, 32], sizes = [8, 32], strides = [1, 1]} : vector<8x96xf32> to vector<8x32xf32>
    %23 = vector.extract_strided_slice %18 {offsets = [0, 64], sizes = [8, 32], strides = [1, 1]} : vector<8x96xf32> to vector<8x32xf32>
    %24 = vector.extract_strided_slice %20 {offsets = [0, 0], sizes = [8, 32], strides = [1, 1]} : vector<8x64xf32> to vector<8x32xf32>
    %25 = vector.extract_strided_slice %20 {offsets = [0, 32], sizes = [8, 32], strides = [1, 1]} : vector<8x64xf32> to vector<8x32xf32>
    %c0_10 = arith.constant 0 : index
    %c0_11 = arith.constant 0 : index
    %26 = vector.load %arg6[%c0_10, %c0_11] : memref<8x32xf32, #tpu.memory_space<vmem>>, vector<8x32xf32>
    %cst_12 = arith.constant 1.000000e+00 : f32
    %27 = vector.broadcast %cst_12 : f32 to vector<8x1xf32>
    %28 = arith.addf %8, %27 : vector<8x1xf32>
    %29 = tpu.reciprocal %28 {approx = true} : vector<8x1xf32> -> vector<8x1xf32>
    %30 = arith.subf %26, %25 : vector<8x32xf32>
    %31 = vector.broadcast %29 : vector<8x1xf32> to vector<8x32xf32>
    %32 = arith.mulf %25, %31 : vector<8x32xf32>
    %33 = arith.addf %30, %32 : vector<8x32xf32>
    %34 = arith.mulf %21, %33 : vector<8x32xf32>
    %35 = arith.mulf %22, %24 : vector<8x32xf32>
    %36 = arith.addf %34, %35 : vector<8x32xf32>
    %37 = math.tanh %36 : vector<8x32xf32>
    %38 = arith.mulf %23, %37 : vector<8x32xf32>
    %c0_13 = arith.constant 0 : index
    %c0_14 = arith.constant 0 : index
    %39 = vector.load %arg6[%c0_13, %c0_14] : memref<8x32xf32, #tpu.memory_space<vmem>>, vector<8x32xf32>
    tpu.vector_store %arg6[%c0_13, %c0_14], %36 {strides = array<i32>} : memref<8x32xf32, #tpu.memory_space<vmem>>, vector<8x32xf32>,
    %40 = arith.truncf %38 : vector<8x32xf32> to vector<8x32xbf16>
    %c0_15 = arith.constant 0 : index
    %c16 = arith.constant 16 : index
    %41 = vector.load %arg5[%c0_15, %c16] : memref<8x96xbf16, #tpu.memory_space<vmem>>, vector<8x32xbf16>
    tpu.vector_store %arg5[%c0_15, %c16], %40 {strides = array<i32>} : memref<8x96xbf16, #tpu.memory_space<vmem>>, vector<8x32xbf16>,
    %42 = arith.truncf %36 : vector<8x32xf32> to vector<8x32xbf16>
    %c0_16 = arith.constant 0 : index
    %c48 = arith.constant 48 : index
    %43 = vector.load %arg5[%c0_16, %c48] : memref<8x96xbf16, #tpu.memory_space<vmem>>, vector<8x32xbf16>
    tpu.vector_store %arg5[%c0_16, %c48], %42 {strides = array<i32>} : memref<8x96xbf16, #tpu.memory_space<vmem>>, vector<8x32xbf16>,
    %c8_i32 = arith.constant 8 : i32
    %44 = arith.muli %arg1, %c8_i32 : i32
    %45 = arith.addi %44, %c0_i32_2 : i32
    %c12_i32 = arith.constant 12 : i32
    %46 = arith.cmpi sge, %45, %c12_i32 : i32
    %47 = arith.extui %46 : i1 to i32
    %c0_i32_17 = arith.constant 0 : i32
    %48 = arith.cmpi ne, %47, %c0_i32_17 : i32
    scf.if %48 {
      %c12_i32_159 = arith.constant 12 : i32
      %364 = arith.subi %45, %c12_i32_159 : i32
      %c0_i32_160 = arith.constant 0 : i32
      %365 = arith.maxsi %364, %c0_i32_160 : i32
      %366 = arith.index_cast %365 : i32 to index
      %c0_161 = arith.constant 0 : index
      %c0_162 = arith.constant 0 : index
      %367 = vector.load %arg4[%366, %c0_161, %c0_162] : memref<4x8x32xf32, #tpu.memory_space<vmem>>, vector<1x8x32xf32>
      %368 = vector.shape_cast %367 : vector<1x8x32xf32> to vector<8x32xf32>
      %369 = vector.shape_cast %38 : vector<8x32xf32> to vector<1x8x32xf32>
      tpu.vector_store %arg4[%366, %c0_161, %c0_162], %369 {strides = array<i32>} : memref<4x8x32xf32, #tpu.memory_space<vmem>>, vector<1x8x32xf32>,
    } else {
    }
    %c1_i32 = arith.constant 1 : i32
    %49 = arith.index_cast %c1_i32 : i32 to index
    %c0_18 = arith.constant 0 : index
    %c0_19 = arith.constant 0 : index
    %50 = vector.load %arg2[%49, %c0_18, %c0_19] : memref<8x8x17xf32, #tpu.memory_space<vmem>>, vector<1x8x17xf32>
    %51 = vector.shape_cast %50 : vector<1x8x17xf32> to vector<8x17xf32>
    %52 = vector.extract_strided_slice %51 {offsets = [0, 0], sizes = [8, 16], strides = [1, 1]} : vector<8x17xf32> to vector<8x16xf32>
    %53 = vector.extract_strided_slice %51 {offsets = [0, 16], sizes = [8, 1], strides = [1, 1]} : vector<8x17xf32> to vector<8x1xf32>
    %54 = arith.truncf %52 : vector<8x16xf32> to vector<8x16xbf16>
    %c0_20 = arith.constant 0 : index
    %c0_21 = arith.constant 0 : index
    %55 = vector.load %arg5[%c0_20, %c0_21] : memref<8x96xbf16, #tpu.memory_space<vmem>>, vector<8x16xbf16>
    tpu.vector_store %arg5[%c0_20, %c0_21], %54 {strides = array<i32>} : memref<8x96xbf16, #tpu.memory_space<vmem>>, vector<8x16xbf16>,
    %c0_22 = arith.constant 0 : index
    %c0_23 = arith.constant 0 : index
    %56 = vector.load %arg5[%c0_22, %c0_23] : memref<8x96xbf16, #tpu.memory_space<vmem>>, vector<8x96xbf16>
    %cst_24 = arith.constant dense<0.000000e+00> : vector<8x160xf32>
    %57 = tpu.matmul %56, %3, %cst_24 {dimension_numbers = #tpu.dot_dimension_numbers<[1], [0], [0], [1], [0, 0, 1, 1], [], []>} : vector<8x96xbf16>, vector<96x160xbf16>, vector<8x160xf32> -> vector<8x160xf32>
    %58 = vector.extract_strided_slice %57 {offsets = [0, 0], sizes = [8, 96], strides = [1, 1]} : vector<8x160xf32> to vector<8x96xf32>
    %59 = arith.negf %58 : vector<8x96xf32>
    %60 = math.exp %59 : vector<8x96xf32>
    %cst_25 = arith.constant 1.000000e+00 : f32
    %61 = vector.broadcast %cst_25 : f32 to vector<8x96xf32>
    %62 = arith.addf %61, %60 : vector<8x96xf32>
    %63 = arith.divf %61, %62 : vector<8x96xf32>
    %64 = vector.extract_strided_slice %57 {offsets = [0, 96], sizes = [8, 64], strides = [1, 1]} : vector<8x160xf32> to vector<8x64xf32>
    %65 = math.tanh %64 : vector<8x64xf32>
    %66 = vector.extract_strided_slice %63 {offsets = [0, 0], sizes = [8, 32], strides = [1, 1]} : vector<8x96xf32> to vector<8x32xf32>
    %67 = vector.extract_strided_slice %63 {offsets = [0, 32], sizes = [8, 32], strides = [1, 1]} : vector<8x96xf32> to vector<8x32xf32>
    %68 = vector.extract_strided_slice %63 {offsets = [0, 64], sizes = [8, 32], strides = [1, 1]} : vector<8x96xf32> to vector<8x32xf32>
    %69 = vector.extract_strided_slice %65 {offsets = [0, 0], sizes = [8, 32], strides = [1, 1]} : vector<8x64xf32> to vector<8x32xf32>
    %70 = vector.extract_strided_slice %65 {offsets = [0, 32], sizes = [8, 32], strides = [1, 1]} : vector<8x64xf32> to vector<8x32xf32>
    %c0_26 = arith.constant 0 : index
    %c0_27 = arith.constant 0 : index
    %71 = vector.load %arg6[%c0_26, %c0_27] : memref<8x32xf32, #tpu.memory_space<vmem>>, vector<8x32xf32>
    %cst_28 = arith.constant 1.000000e+00 : f32
    %72 = vector.broadcast %cst_28 : f32 to vector<8x1xf32>
    %73 = arith.addf %53, %72 : vector<8x1xf32>
    %74 = tpu.reciprocal %73 {approx = true} : vector<8x1xf32> -> vector<8x1xf32>
    %75 = arith.subf %71, %70 : vector<8x32xf32>
    %76 = vector.broadcast %74 : vector<8x1xf32> to vector<8x32xf32>
    %77 = arith.mulf %70, %76 : vector<8x32xf32>
    %78 = arith.addf %75, %77 : vector<8x32xf32>
    %79 = arith.mulf %66, %78 : vector<8x32xf32>
    %80 = arith.mulf %67, %69 : vector<8x32xf32>
    %81 = arith.addf %79, %80 : vector<8x32xf32>
    %82 = math.tanh %81 : vector<8x32xf32>
    %83 = arith.mulf %68, %82 : vector<8x32xf32>
    %c0_29 = arith.constant 0 : index
    %c0_30 = arith.constant 0 : index
    %84 = vector.load %arg6[%c0_29, %c0_30] : memref<8x32xf32, #tpu.memory_space<vmem>>, vector<8x32xf32>
    tpu.vector_store %arg6[%c0_29, %c0_30], %81 {strides = array<i32>} : memref<8x32xf32, #tpu.memory_space<vmem>>, vector<8x32xf32>,
    %85 = arith.truncf %83 : vector<8x32xf32> to vector<8x32xbf16>
    %c0_31 = arith.constant 0 : index
    %c16_32 = arith.constant 16 : index
    %86 = vector.load %arg5[%c0_31, %c16_32] : memref<8x96xbf16, #tpu.memory_space<vmem>>, vector<8x32xbf16>
    tpu.vector_store %arg5[%c0_31, %c16_32], %85 {strides = array<i32>} : memref<8x96xbf16, #tpu.memory_space<vmem>>, vector<8x32xbf16>,
    %87 = arith.truncf %81 : vector<8x32xf32> to vector<8x32xbf16>
    %c0_33 = arith.constant 0 : index
    %c48_34 = arith.constant 48 : index
    %88 = vector.load %arg5[%c0_33, %c48_34] : memref<8x96xbf16, #tpu.memory_space<vmem>>, vector<8x32xbf16>
    tpu.vector_store %arg5[%c0_33, %c48_34], %87 {strides = array<i32>} : memref<8x96xbf16, #tpu.memory_space<vmem>>, vector<8x32xbf16>,
    %c8_i32_35 = arith.constant 8 : i32
    %89 = arith.muli %arg1, %c8_i32_35 : i32
    %90 = arith.addi %89, %c1_i32 : i32
    %c12_i32_36 = arith.constant 12 : i32
    %91 = arith.cmpi sge, %90, %c12_i32_36 : i32
    %92 = arith.extui %91 : i1 to i32
    %c0_i32_37 = arith.constant 0 : i32
    %93 = arith.cmpi ne, %92, %c0_i32_37 : i32
    scf.if %93 {
      %c12_i32_159 = arith.constant 12 : i32
      %364 = arith.subi %90, %c12_i32_159 : i32
      %c0_i32_160 = arith.constant 0 : i32
      %365 = arith.maxsi %364, %c0_i32_160 : i32
      %366 = arith.index_cast %365 : i32 to index
      %c0_161 = arith.constant 0 : index
      %c0_162 = arith.constant 0 : index
      %367 = vector.load %arg4[%366, %c0_161, %c0_162] : memref<4x8x32xf32, #tpu.memory_space<vmem>>, vector<1x8x32xf32>
      %368 = vector.shape_cast %367 : vector<1x8x32xf32> to vector<8x32xf32>
      %369 = vector.shape_cast %83 : vector<8x32xf32> to vector<1x8x32xf32>
      tpu.vector_store %arg4[%366, %c0_161, %c0_162], %369 {strides = array<i32>} : memref<4x8x32xf32, #tpu.memory_space<vmem>>, vector<1x8x32xf32>,
    } else {
    }
    %c2_i32 = arith.constant 2 : i32
    %94 = arith.index_cast %c2_i32 : i32 to index
    %c0_38 = arith.constant 0 : index
    %c0_39 = arith.constant 0 : index
    %95 = vector.load %arg2[%94, %c0_38, %c0_39] : memref<8x8x17xf32, #tpu.memory_space<vmem>>, vector<1x8x17xf32>
    %96 = vector.shape_cast %95 : vector<1x8x17xf32> to vector<8x17xf32>
    %97 = vector.extract_strided_slice %96 {offsets = [0, 0], sizes = [8, 16], strides = [1, 1]} : vector<8x17xf32> to vector<8x16xf32>
    %98 = vector.extract_strided_slice %96 {offsets = [0, 16], sizes = [8, 1], strides = [1, 1]} : vector<8x17xf32> to vector<8x1xf32>
    %99 = arith.truncf %97 : vector<8x16xf32> to vector<8x16xbf16>
    %c0_40 = arith.constant 0 : index
    %c0_41 = arith.constant 0 : index
    %100 = vector.load %arg5[%c0_40, %c0_41] : memref<8x96xbf16, #tpu.memory_space<vmem>>, vector<8x16xbf16>
    tpu.vector_store %arg5[%c0_40, %c0_41], %99 {strides = array<i32>} : memref<8x96xbf16, #tpu.memory_space<vmem>>, vector<8x16xbf16>,
    %c0_42 = arith.constant 0 : index
    %c0_43 = arith.constant 0 : index
    %101 = vector.load %arg5[%c0_42, %c0_43] : memref<8x96xbf16, #tpu.memory_space<vmem>>, vector<8x96xbf16>
    %cst_44 = arith.constant dense<0.000000e+00> : vector<8x160xf32>
    %102 = tpu.matmul %101, %3, %cst_44 {dimension_numbers = #tpu.dot_dimension_numbers<[1], [0], [0], [1], [0, 0, 1, 1], [], []>} : vector<8x96xbf16>, vector<96x160xbf16>, vector<8x160xf32> -> vector<8x160xf32>
    %103 = vector.extract_strided_slice %102 {offsets = [0, 0], sizes = [8, 96], strides = [1, 1]} : vector<8x160xf32> to vector<8x96xf32>
    %104 = arith.negf %103 : vector<8x96xf32>
    %105 = math.exp %104 : vector<8x96xf32>
    %cst_45 = arith.constant 1.000000e+00 : f32
    %106 = vector.broadcast %cst_45 : f32 to vector<8x96xf32>
    %107 = arith.addf %106, %105 : vector<8x96xf32>
    %108 = arith.divf %106, %107 : vector<8x96xf32>
    %109 = vector.extract_strided_slice %102 {offsets = [0, 96], sizes = [8, 64], strides = [1, 1]} : vector<8x160xf32> to vector<8x64xf32>
    %110 = math.tanh %109 : vector<8x64xf32>
    %111 = vector.extract_strided_slice %108 {offsets = [0, 0], sizes = [8, 32], strides = [1, 1]} : vector<8x96xf32> to vector<8x32xf32>
    %112 = vector.extract_strided_slice %108 {offsets = [0, 32], sizes = [8, 32], strides = [1, 1]} : vector<8x96xf32> to vector<8x32xf32>
    %113 = vector.extract_strided_slice %108 {offsets = [0, 64], sizes = [8, 32], strides = [1, 1]} : vector<8x96xf32> to vector<8x32xf32>
    %114 = vector.extract_strided_slice %110 {offsets = [0, 0], sizes = [8, 32], strides = [1, 1]} : vector<8x64xf32> to vector<8x32xf32>
    %115 = vector.extract_strided_slice %110 {offsets = [0, 32], sizes = [8, 32], strides = [1, 1]} : vector<8x64xf32> to vector<8x32xf32>
    %c0_46 = arith.constant 0 : index
    %c0_47 = arith.constant 0 : index
    %116 = vector.load %arg6[%c0_46, %c0_47] : memref<8x32xf32, #tpu.memory_space<vmem>>, vector<8x32xf32>
    %cst_48 = arith.constant 1.000000e+00 : f32
    %117 = vector.broadcast %cst_48 : f32 to vector<8x1xf32>
    %118 = arith.addf %98, %117 : vector<8x1xf32>
    %119 = tpu.reciprocal %118 {approx = true} : vector<8x1xf32> -> vector<8x1xf32>
    %120 = arith.subf %116, %115 : vector<8x32xf32>
    %121 = vector.broadcast %119 : vector<8x1xf32> to vector<8x32xf32>
    %122 = arith.mulf %115, %121 : vector<8x32xf32>
    %123 = arith.addf %120, %122 : vector<8x32xf32>
    %124 = arith.mulf %111, %123 : vector<8x32xf32>
    %125 = arith.mulf %112, %114 : vector<8x32xf32>
    %126 = arith.addf %124, %125 : vector<8x32xf32>
    %127 = math.tanh %126 : vector<8x32xf32>
    %128 = arith.mulf %113, %127 : vector<8x32xf32>
    %c0_49 = arith.constant 0 : index
    %c0_50 = arith.constant 0 : index
    %129 = vector.load %arg6[%c0_49, %c0_50] : memref<8x32xf32, #tpu.memory_space<vmem>>, vector<8x32xf32>
    tpu.vector_store %arg6[%c0_49, %c0_50], %126 {strides = array<i32>} : memref<8x32xf32, #tpu.memory_space<vmem>>, vector<8x32xf32>,
    %130 = arith.truncf %128 : vector<8x32xf32> to vector<8x32xbf16>
    %c0_51 = arith.constant 0 : index
    %c16_52 = arith.constant 16 : index
    %131 = vector.load %arg5[%c0_51, %c16_52] : memref<8x96xbf16, #tpu.memory_space<vmem>>, vector<8x32xbf16>
    tpu.vector_store %arg5[%c0_51, %c16_52], %130 {strides = array<i32>} : memref<8x96xbf16, #tpu.memory_space<vmem>>, vector<8x32xbf16>,
    %132 = arith.truncf %126 : vector<8x32xf32> to vector<8x32xbf16>
    %c0_53 = arith.constant 0 : index
    %c48_54 = arith.constant 48 : index
    %133 = vector.load %arg5[%c0_53, %c48_54] : memref<8x96xbf16, #tpu.memory_space<vmem>>, vector<8x32xbf16>
    tpu.vector_store %arg5[%c0_53, %c48_54], %132 {strides = array<i32>} : memref<8x96xbf16, #tpu.memory_space<vmem>>, vector<8x32xbf16>,
    %c8_i32_55 = arith.constant 8 : i32
    %134 = arith.muli %arg1, %c8_i32_55 : i32
    %135 = arith.addi %134, %c2_i32 : i32
    %c12_i32_56 = arith.constant 12 : i32
    %136 = arith.cmpi sge, %135, %c12_i32_56 : i32
    %137 = arith.extui %136 : i1 to i32
    %c0_i32_57 = arith.constant 0 : i32
    %138 = arith.cmpi ne, %137, %c0_i32_57 : i32
    scf.if %138 {
      %c12_i32_159 = arith.constant 12 : i32
      %364 = arith.subi %135, %c12_i32_159 : i32
      %c0_i32_160 = arith.constant 0 : i32
      %365 = arith.maxsi %364, %c0_i32_160 : i32
      %366 = arith.index_cast %365 : i32 to index
      %c0_161 = arith.constant 0 : index
      %c0_162 = arith.constant 0 : index
      %367 = vector.load %arg4[%366, %c0_161, %c0_162] : memref<4x8x32xf32, #tpu.memory_space<vmem>>, vector<1x8x32xf32>
      %368 = vector.shape_cast %367 : vector<1x8x32xf32> to vector<8x32xf32>
      %369 = vector.shape_cast %128 : vector<8x32xf32> to vector<1x8x32xf32>
      tpu.vector_store %arg4[%366, %c0_161, %c0_162], %369 {strides = array<i32>} : memref<4x8x32xf32, #tpu.memory_space<vmem>>, vector<1x8x32xf32>,
    } else {
    }
    %c3_i32 = arith.constant 3 : i32
    %139 = arith.index_cast %c3_i32 : i32 to index
    %c0_58 = arith.constant 0 : index
    %c0_59 = arith.constant 0 : index
    %140 = vector.load %arg2[%139, %c0_58, %c0_59] : memref<8x8x17xf32, #tpu.memory_space<vmem>>, vector<1x8x17xf32>
    %141 = vector.shape_cast %140 : vector<1x8x17xf32> to vector<8x17xf32>
    %142 = vector.extract_strided_slice %141 {offsets = [0, 0], sizes = [8, 16], strides = [1, 1]} : vector<8x17xf32> to vector<8x16xf32>
    %143 = vector.extract_strided_slice %141 {offsets = [0, 16], sizes = [8, 1], strides = [1, 1]} : vector<8x17xf32> to vector<8x1xf32>
    %144 = arith.truncf %142 : vector<8x16xf32> to vector<8x16xbf16>
    %c0_60 = arith.constant 0 : index
    %c0_61 = arith.constant 0 : index
    %145 = vector.load %arg5[%c0_60, %c0_61] : memref<8x96xbf16, #tpu.memory_space<vmem>>, vector<8x16xbf16>
    tpu.vector_store %arg5[%c0_60, %c0_61], %144 {strides = array<i32>} : memref<8x96xbf16, #tpu.memory_space<vmem>>, vector<8x16xbf16>,
    %c0_62 = arith.constant 0 : index
    %c0_63 = arith.constant 0 : index
    %146 = vector.load %arg5[%c0_62, %c0_63] : memref<8x96xbf16, #tpu.memory_space<vmem>>, vector<8x96xbf16>
    %cst_64 = arith.constant dense<0.000000e+00> : vector<8x160xf32>
    %147 = tpu.matmul %146, %3, %cst_64 {dimension_numbers = #tpu.dot_dimension_numbers<[1], [0], [0], [1], [0, 0, 1, 1], [], []>} : vector<8x96xbf16>, vector<96x160xbf16>, vector<8x160xf32> -> vector<8x160xf32>
    %148 = vector.extract_strided_slice %147 {offsets = [0, 0], sizes = [8, 96], strides = [1, 1]} : vector<8x160xf32> to vector<8x96xf32>
    %149 = arith.negf %148 : vector<8x96xf32>
    %150 = math.exp %149 : vector<8x96xf32>
    %cst_65 = arith.constant 1.000000e+00 : f32
    %151 = vector.broadcast %cst_65 : f32 to vector<8x96xf32>
    %152 = arith.addf %151, %150 : vector<8x96xf32>
    %153 = arith.divf %151, %152 : vector<8x96xf32>
    %154 = vector.extract_strided_slice %147 {offsets = [0, 96], sizes = [8, 64], strides = [1, 1]} : vector<8x160xf32> to vector<8x64xf32>
    %155 = math.tanh %154 : vector<8x64xf32>
    %156 = vector.extract_strided_slice %153 {offsets = [0, 0], sizes = [8, 32], strides = [1, 1]} : vector<8x96xf32> to vector<8x32xf32>
    %157 = vector.extract_strided_slice %153 {offsets = [0, 32], sizes = [8, 32], strides = [1, 1]} : vector<8x96xf32> to vector<8x32xf32>
    %158 = vector.extract_strided_slice %153 {offsets = [0, 64], sizes = [8, 32], strides = [1, 1]} : vector<8x96xf32> to vector<8x32xf32>
    %159 = vector.extract_strided_slice %155 {offsets = [0, 0], sizes = [8, 32], strides = [1, 1]} : vector<8x64xf32> to vector<8x32xf32>
    %160 = vector.extract_strided_slice %155 {offsets = [0, 32], sizes = [8, 32], strides = [1, 1]} : vector<8x64xf32> to vector<8x32xf32>
    %c0_66 = arith.constant 0 : index
    %c0_67 = arith.constant 0 : index
    %161 = vector.load %arg6[%c0_66, %c0_67] : memref<8x32xf32, #tpu.memory_space<vmem>>, vector<8x32xf32>
    %cst_68 = arith.constant 1.000000e+00 : f32
    %162 = vector.broadcast %cst_68 : f32 to vector<8x1xf32>
    %163 = arith.addf %143, %162 : vector<8x1xf32>
    %164 = tpu.reciprocal %163 {approx = true} : vector<8x1xf32> -> vector<8x1xf32>
    %165 = arith.subf %161, %160 : vector<8x32xf32>
    %166 = vector.broadcast %164 : vector<8x1xf32> to vector<8x32xf32>
    %167 = arith.mulf %160, %166 : vector<8x32xf32>
    %168 = arith.addf %165, %167 : vector<8x32xf32>
    %169 = arith.mulf %156, %168 : vector<8x32xf32>
    %170 = arith.mulf %157, %159 : vector<8x32xf32>
    %171 = arith.addf %169, %170 : vector<8x32xf32>
    %172 = math.tanh %171 : vector<8x32xf32>
    %173 = arith.mulf %158, %172 : vector<8x32xf32>
    %c0_69 = arith.constant 0 : index
    %c0_70 = arith.constant 0 : index
    %174 = vector.load %arg6[%c0_69, %c0_70] : memref<8x32xf32, #tpu.memory_space<vmem>>, vector<8x32xf32>
    tpu.vector_store %arg6[%c0_69, %c0_70], %171 {strides = array<i32>} : memref<8x32xf32, #tpu.memory_space<vmem>>, vector<8x32xf32>,
    %175 = arith.truncf %173 : vector<8x32xf32> to vector<8x32xbf16>
    %c0_71 = arith.constant 0 : index
    %c16_72 = arith.constant 16 : index
    %176 = vector.load %arg5[%c0_71, %c16_72] : memref<8x96xbf16, #tpu.memory_space<vmem>>, vector<8x32xbf16>
    tpu.vector_store %arg5[%c0_71, %c16_72], %175 {strides = array<i32>} : memref<8x96xbf16, #tpu.memory_space<vmem>>, vector<8x32xbf16>,
    %177 = arith.truncf %171 : vector<8x32xf32> to vector<8x32xbf16>
    %c0_73 = arith.constant 0 : index
    %c48_74 = arith.constant 48 : index
    %178 = vector.load %arg5[%c0_73, %c48_74] : memref<8x96xbf16, #tpu.memory_space<vmem>>, vector<8x32xbf16>
    tpu.vector_store %arg5[%c0_73, %c48_74], %177 {strides = array<i32>} : memref<8x96xbf16, #tpu.memory_space<vmem>>, vector<8x32xbf16>,
    %c8_i32_75 = arith.constant 8 : i32
    %179 = arith.muli %arg1, %c8_i32_75 : i32
    %180 = arith.addi %179, %c3_i32 : i32
    %c12_i32_76 = arith.constant 12 : i32
    %181 = arith.cmpi sge, %180, %c12_i32_76 : i32
    %182 = arith.extui %181 : i1 to i32
    %c0_i32_77 = arith.constant 0 : i32
    %183 = arith.cmpi ne, %182, %c0_i32_77 : i32
    scf.if %183 {
      %c12_i32_159 = arith.constant 12 : i32
      %364 = arith.subi %180, %c12_i32_159 : i32
      %c0_i32_160 = arith.constant 0 : i32
      %365 = arith.maxsi %364, %c0_i32_160 : i32
      %366 = arith.index_cast %365 : i32 to index
      %c0_161 = arith.constant 0 : index
      %c0_162 = arith.constant 0 : index
      %367 = vector.load %arg4[%366, %c0_161, %c0_162] : memref<4x8x32xf32, #tpu.memory_space<vmem>>, vector<1x8x32xf32>
      %368 = vector.shape_cast %367 : vector<1x8x32xf32> to vector<8x32xf32>
      %369 = vector.shape_cast %173 : vector<8x32xf32> to vector<1x8x32xf32>
      tpu.vector_store %arg4[%366, %c0_161, %c0_162], %369 {strides = array<i32>} : memref<4x8x32xf32, #tpu.memory_space<vmem>>, vector<1x8x32xf32>,
    } else {
    }
    %c4_i32 = arith.constant 4 : i32
    %184 = arith.index_cast %c4_i32 : i32 to index
    %c0_78 = arith.constant 0 : index
    %c0_79 = arith.constant 0 : index
    %185 = vector.load %arg2[%184, %c0_78, %c0_79] : memref<8x8x17xf32, #tpu.memory_space<vmem>>, vector<1x8x17xf32>
    %186 = vector.shape_cast %185 : vector<1x8x17xf32> to vector<8x17xf32>
    %187 = vector.extract_strided_slice %186 {offsets = [0, 0], sizes = [8, 16], strides = [1, 1]} : vector<8x17xf32> to vector<8x16xf32>
    %188 = vector.extract_strided_slice %186 {offsets = [0, 16], sizes = [8, 1], strides = [1, 1]} : vector<8x17xf32> to vector<8x1xf32>
    %189 = arith.truncf %187 : vector<8x16xf32> to vector<8x16xbf16>
    %c0_80 = arith.constant 0 : index
    %c0_81 = arith.constant 0 : index
    %190 = vector.load %arg5[%c0_80, %c0_81] : memref<8x96xbf16, #tpu.memory_space<vmem>>, vector<8x16xbf16>
    tpu.vector_store %arg5[%c0_80, %c0_81], %189 {strides = array<i32>} : memref<8x96xbf16, #tpu.memory_space<vmem>>, vector<8x16xbf16>,
    %c0_82 = arith.constant 0 : index
    %c0_83 = arith.constant 0 : index
    %191 = vector.load %arg5[%c0_82, %c0_83] : memref<8x96xbf16, #tpu.memory_space<vmem>>, vector<8x96xbf16>
    %cst_84 = arith.constant dense<0.000000e+00> : vector<8x160xf32>
    %192 = tpu.matmul %191, %3, %cst_84 {dimension_numbers = #tpu.dot_dimension_numbers<[1], [0], [0], [1], [0, 0, 1, 1], [], []>} : vector<8x96xbf16>, vector<96x160xbf16>, vector<8x160xf32> -> vector<8x160xf32>
    %193 = vector.extract_strided_slice %192 {offsets = [0, 0], sizes = [8, 96], strides = [1, 1]} : vector<8x160xf32> to vector<8x96xf32>
    %194 = arith.negf %193 : vector<8x96xf32>
    %195 = math.exp %194 : vector<8x96xf32>
    %cst_85 = arith.constant 1.000000e+00 : f32
    %196 = vector.broadcast %cst_85 : f32 to vector<8x96xf32>
    %197 = arith.addf %196, %195 : vector<8x96xf32>
    %198 = arith.divf %196, %197 : vector<8x96xf32>
    %199 = vector.extract_strided_slice %192 {offsets = [0, 96], sizes = [8, 64], strides = [1, 1]} : vector<8x160xf32> to vector<8x64xf32>
    %200 = math.tanh %199 : vector<8x64xf32>
    %201 = vector.extract_strided_slice %198 {offsets = [0, 0], sizes = [8, 32], strides = [1, 1]} : vector<8x96xf32> to vector<8x32xf32>
    %202 = vector.extract_strided_slice %198 {offsets = [0, 32], sizes = [8, 32], strides = [1, 1]} : vector<8x96xf32> to vector<8x32xf32>
    %203 = vector.extract_strided_slice %198 {offsets = [0, 64], sizes = [8, 32], strides = [1, 1]} : vector<8x96xf32> to vector<8x32xf32>
    %204 = vector.extract_strided_slice %200 {offsets = [0, 0], sizes = [8, 32], strides = [1, 1]} : vector<8x64xf32> to vector<8x32xf32>
    %205 = vector.extract_strided_slice %200 {offsets = [0, 32], sizes = [8, 32], strides = [1, 1]} : vector<8x64xf32> to vector<8x32xf32>
    %c0_86 = arith.constant 0 : index
    %c0_87 = arith.constant 0 : index
    %206 = vector.load %arg6[%c0_86, %c0_87] : memref<8x32xf32, #tpu.memory_space<vmem>>, vector<8x32xf32>
    %cst_88 = arith.constant 1.000000e+00 : f32
    %207 = vector.broadcast %cst_88 : f32 to vector<8x1xf32>
    %208 = arith.addf %188, %207 : vector<8x1xf32>
    %209 = tpu.reciprocal %208 {approx = true} : vector<8x1xf32> -> vector<8x1xf32>
    %210 = arith.subf %206, %205 : vector<8x32xf32>
    %211 = vector.broadcast %209 : vector<8x1xf32> to vector<8x32xf32>
    %212 = arith.mulf %205, %211 : vector<8x32xf32>
    %213 = arith.addf %210, %212 : vector<8x32xf32>
    %214 = arith.mulf %201, %213 : vector<8x32xf32>
    %215 = arith.mulf %202, %204 : vector<8x32xf32>
    %216 = arith.addf %214, %215 : vector<8x32xf32>
    %217 = math.tanh %216 : vector<8x32xf32>
    %218 = arith.mulf %203, %217 : vector<8x32xf32>
    %c0_89 = arith.constant 0 : index
    %c0_90 = arith.constant 0 : index
    %219 = vector.load %arg6[%c0_89, %c0_90] : memref<8x32xf32, #tpu.memory_space<vmem>>, vector<8x32xf32>
    tpu.vector_store %arg6[%c0_89, %c0_90], %216 {strides = array<i32>} : memref<8x32xf32, #tpu.memory_space<vmem>>, vector<8x32xf32>,
    %220 = arith.truncf %218 : vector<8x32xf32> to vector<8x32xbf16>
    %c0_91 = arith.constant 0 : index
    %c16_92 = arith.constant 16 : index
    %221 = vector.load %arg5[%c0_91, %c16_92] : memref<8x96xbf16, #tpu.memory_space<vmem>>, vector<8x32xbf16>
    tpu.vector_store %arg5[%c0_91, %c16_92], %220 {strides = array<i32>} : memref<8x96xbf16, #tpu.memory_space<vmem>>, vector<8x32xbf16>,
    %222 = arith.truncf %216 : vector<8x32xf32> to vector<8x32xbf16>
    %c0_93 = arith.constant 0 : index
    %c48_94 = arith.constant 48 : index
    %223 = vector.load %arg5[%c0_93, %c48_94] : memref<8x96xbf16, #tpu.memory_space<vmem>>, vector<8x32xbf16>
    tpu.vector_store %arg5[%c0_93, %c48_94], %222 {strides = array<i32>} : memref<8x96xbf16, #tpu.memory_space<vmem>>, vector<8x32xbf16>,
    %c8_i32_95 = arith.constant 8 : i32
    %224 = arith.muli %arg1, %c8_i32_95 : i32
    %225 = arith.addi %224, %c4_i32 : i32
    %c12_i32_96 = arith.constant 12 : i32
    %226 = arith.cmpi sge, %225, %c12_i32_96 : i32
    %227 = arith.extui %226 : i1 to i32
    %c0_i32_97 = arith.constant 0 : i32
    %228 = arith.cmpi ne, %227, %c0_i32_97 : i32
    scf.if %228 {
      %c12_i32_159 = arith.constant 12 : i32
      %364 = arith.subi %225, %c12_i32_159 : i32
      %c0_i32_160 = arith.constant 0 : i32
      %365 = arith.maxsi %364, %c0_i32_160 : i32
      %366 = arith.index_cast %365 : i32 to index
      %c0_161 = arith.constant 0 : index
      %c0_162 = arith.constant 0 : index
      %367 = vector.load %arg4[%366, %c0_161, %c0_162] : memref<4x8x32xf32, #tpu.memory_space<vmem>>, vector<1x8x32xf32>
      %368 = vector.shape_cast %367 : vector<1x8x32xf32> to vector<8x32xf32>
      %369 = vector.shape_cast %218 : vector<8x32xf32> to vector<1x8x32xf32>
      tpu.vector_store %arg4[%366, %c0_161, %c0_162], %369 {strides = array<i32>} : memref<4x8x32xf32, #tpu.memory_space<vmem>>, vector<1x8x32xf32>,
    } else {
    }
    %c5_i32 = arith.constant 5 : i32
    %229 = arith.index_cast %c5_i32 : i32 to index
    %c0_98 = arith.constant 0 : index
    %c0_99 = arith.constant 0 : index
    %230 = vector.load %arg2[%229, %c0_98, %c0_99] : memref<8x8x17xf32, #tpu.memory_space<vmem>>, vector<1x8x17xf32>
    %231 = vector.shape_cast %230 : vector<1x8x17xf32> to vector<8x17xf32>
    %232 = vector.extract_strided_slice %231 {offsets = [0, 0], sizes = [8, 16], strides = [1, 1]} : vector<8x17xf32> to vector<8x16xf32>
    %233 = vector.extract_strided_slice %231 {offsets = [0, 16], sizes = [8, 1], strides = [1, 1]} : vector<8x17xf32> to vector<8x1xf32>
    %234 = arith.truncf %232 : vector<8x16xf32> to vector<8x16xbf16>
    %c0_100 = arith.constant 0 : index
    %c0_101 = arith.constant 0 : index
    %235 = vector.load %arg5[%c0_100, %c0_101] : memref<8x96xbf16, #tpu.memory_space<vmem>>, vector<8x16xbf16>
    tpu.vector_store %arg5[%c0_100, %c0_101], %234 {strides = array<i32>} : memref<8x96xbf16, #tpu.memory_space<vmem>>, vector<8x16xbf16>,
    %c0_102 = arith.constant 0 : index
    %c0_103 = arith.constant 0 : index
    %236 = vector.load %arg5[%c0_102, %c0_103] : memref<8x96xbf16, #tpu.memory_space<vmem>>, vector<8x96xbf16>
    %cst_104 = arith.constant dense<0.000000e+00> : vector<8x160xf32>
    %237 = tpu.matmul %236, %3, %cst_104 {dimension_numbers = #tpu.dot_dimension_numbers<[1], [0], [0], [1], [0, 0, 1, 1], [], []>} : vector<8x96xbf16>, vector<96x160xbf16>, vector<8x160xf32> -> vector<8x160xf32>
    %238 = vector.extract_strided_slice %237 {offsets = [0, 0], sizes = [8, 96], strides = [1, 1]} : vector<8x160xf32> to vector<8x96xf32>
    %239 = arith.negf %238 : vector<8x96xf32>
    %240 = math.exp %239 : vector<8x96xf32>
    %cst_105 = arith.constant 1.000000e+00 : f32
    %241 = vector.broadcast %cst_105 : f32 to vector<8x96xf32>
    %242 = arith.addf %241, %240 : vector<8x96xf32>
    %243 = arith.divf %241, %242 : vector<8x96xf32>
    %244 = vector.extract_strided_slice %237 {offsets = [0, 96], sizes = [8, 64], strides = [1, 1]} : vector<8x160xf32> to vector<8x64xf32>
    %245 = math.tanh %244 : vector<8x64xf32>
    %246 = vector.extract_strided_slice %243 {offsets = [0, 0], sizes = [8, 32], strides = [1, 1]} : vector<8x96xf32> to vector<8x32xf32>
    %247 = vector.extract_strided_slice %243 {offsets = [0, 32], sizes = [8, 32], strides = [1, 1]} : vector<8x96xf32> to vector<8x32xf32>
    %248 = vector.extract_strided_slice %243 {offsets = [0, 64], sizes = [8, 32], strides = [1, 1]} : vector<8x96xf32> to vector<8x32xf32>
    %249 = vector.extract_strided_slice %245 {offsets = [0, 0], sizes = [8, 32], strides = [1, 1]} : vector<8x64xf32> to vector<8x32xf32>
    %250 = vector.extract_strided_slice %245 {offsets = [0, 32], sizes = [8, 32], strides = [1, 1]} : vector<8x64xf32> to vector<8x32xf32>
    %c0_106 = arith.constant 0 : index
    %c0_107 = arith.constant 0 : index
    %251 = vector.load %arg6[%c0_106, %c0_107] : memref<8x32xf32, #tpu.memory_space<vmem>>, vector<8x32xf32>
    %cst_108 = arith.constant 1.000000e+00 : f32
    %252 = vector.broadcast %cst_108 : f32 to vector<8x1xf32>
    %253 = arith.addf %233, %252 : vector<8x1xf32>
    %254 = tpu.reciprocal %253 {approx = true} : vector<8x1xf32> -> vector<8x1xf32>
    %255 = arith.subf %251, %250 : vector<8x32xf32>
    %256 = vector.broadcast %254 : vector<8x1xf32> to vector<8x32xf32>
    %257 = arith.mulf %250, %256 : vector<8x32xf32>
    %258 = arith.addf %255, %257 : vector<8x32xf32>
    %259 = arith.mulf %246, %258 : vector<8x32xf32>
    %260 = arith.mulf %247, %249 : vector<8x32xf32>
    %261 = arith.addf %259, %260 : vector<8x32xf32>
    %262 = math.tanh %261 : vector<8x32xf32>
    %263 = arith.mulf %248, %262 : vector<8x32xf32>
    %c0_109 = arith.constant 0 : index
    %c0_110 = arith.constant 0 : index
    %264 = vector.load %arg6[%c0_109, %c0_110] : memref<8x32xf32, #tpu.memory_space<vmem>>, vector<8x32xf32>
    tpu.vector_store %arg6[%c0_109, %c0_110], %261 {strides = array<i32>} : memref<8x32xf32, #tpu.memory_space<vmem>>, vector<8x32xf32>,
    %265 = arith.truncf %263 : vector<8x32xf32> to vector<8x32xbf16>
    %c0_111 = arith.constant 0 : index
    %c16_112 = arith.constant 16 : index
    %266 = vector.load %arg5[%c0_111, %c16_112] : memref<8x96xbf16, #tpu.memory_space<vmem>>, vector<8x32xbf16>
    tpu.vector_store %arg5[%c0_111, %c16_112], %265 {strides = array<i32>} : memref<8x96xbf16, #tpu.memory_space<vmem>>, vector<8x32xbf16>,
    %267 = arith.truncf %261 : vector<8x32xf32> to vector<8x32xbf16>
    %c0_113 = arith.constant 0 : index
    %c48_114 = arith.constant 48 : index
    %268 = vector.load %arg5[%c0_113, %c48_114] : memref<8x96xbf16, #tpu.memory_space<vmem>>, vector<8x32xbf16>
    tpu.vector_store %arg5[%c0_113, %c48_114], %267 {strides = array<i32>} : memref<8x96xbf16, #tpu.memory_space<vmem>>, vector<8x32xbf16>,
    %c8_i32_115 = arith.constant 8 : i32
    %269 = arith.muli %arg1, %c8_i32_115 : i32
    %270 = arith.addi %269, %c5_i32 : i32
    %c12_i32_116 = arith.constant 12 : i32
    %271 = arith.cmpi sge, %270, %c12_i32_116 : i32
    %272 = arith.extui %271 : i1 to i32
    %c0_i32_117 = arith.constant 0 : i32
    %273 = arith.cmpi ne, %272, %c0_i32_117 : i32
    scf.if %273 {
      %c12_i32_159 = arith.constant 12 : i32
      %364 = arith.subi %270, %c12_i32_159 : i32
      %c0_i32_160 = arith.constant 0 : i32
      %365 = arith.maxsi %364, %c0_i32_160 : i32
      %366 = arith.index_cast %365 : i32 to index
      %c0_161 = arith.constant 0 : index
      %c0_162 = arith.constant 0 : index
      %367 = vector.load %arg4[%366, %c0_161, %c0_162] : memref<4x8x32xf32, #tpu.memory_space<vmem>>, vector<1x8x32xf32>
      %368 = vector.shape_cast %367 : vector<1x8x32xf32> to vector<8x32xf32>
      %369 = vector.shape_cast %263 : vector<8x32xf32> to vector<1x8x32xf32>
      tpu.vector_store %arg4[%366, %c0_161, %c0_162], %369 {strides = array<i32>} : memref<4x8x32xf32, #tpu.memory_space<vmem>>, vector<1x8x32xf32>,
    } else {
    }
    %c6_i32 = arith.constant 6 : i32
    %274 = arith.index_cast %c6_i32 : i32 to index
    %c0_118 = arith.constant 0 : index
    %c0_119 = arith.constant 0 : index
    %275 = vector.load %arg2[%274, %c0_118, %c0_119] : memref<8x8x17xf32, #tpu.memory_space<vmem>>, vector<1x8x17xf32>
    %276 = vector.shape_cast %275 : vector<1x8x17xf32> to vector<8x17xf32>
    %277 = vector.extract_strided_slice %276 {offsets = [0, 0], sizes = [8, 16], strides = [1, 1]} : vector<8x17xf32> to vector<8x16xf32>
    %278 = vector.extract_strided_slice %276 {offsets = [0, 16], sizes = [8, 1], strides = [1, 1]} : vector<8x17xf32> to vector<8x1xf32>
    %279 = arith.truncf %277 : vector<8x16xf32> to vector<8x16xbf16>
    %c0_120 = arith.constant 0 : index
    %c0_121 = arith.constant 0 : index
    %280 = vector.load %arg5[%c0_120, %c0_121] : memref<8x96xbf16, #tpu.memory_space<vmem>>, vector<8x16xbf16>
    tpu.vector_store %arg5[%c0_120, %c0_121], %279 {strides = array<i32>} : memref<8x96xbf16, #tpu.memory_space<vmem>>, vector<8x16xbf16>,
    %c0_122 = arith.constant 0 : index
    %c0_123 = arith.constant 0 : index
    %281 = vector.load %arg5[%c0_122, %c0_123] : memref<8x96xbf16, #tpu.memory_space<vmem>>, vector<8x96xbf16>
    %cst_124 = arith.constant dense<0.000000e+00> : vector<8x160xf32>
    %282 = tpu.matmul %281, %3, %cst_124 {dimension_numbers = #tpu.dot_dimension_numbers<[1], [0], [0], [1], [0, 0, 1, 1], [], []>} : vector<8x96xbf16>, vector<96x160xbf16>, vector<8x160xf32> -> vector<8x160xf32>
    %283 = vector.extract_strided_slice %282 {offsets = [0, 0], sizes = [8, 96], strides = [1, 1]} : vector<8x160xf32> to vector<8x96xf32>
    %284 = arith.negf %283 : vector<8x96xf32>
    %285 = math.exp %284 : vector<8x96xf32>
    %cst_125 = arith.constant 1.000000e+00 : f32
    %286 = vector.broadcast %cst_125 : f32 to vector<8x96xf32>
    %287 = arith.addf %286, %285 : vector<8x96xf32>
    %288 = arith.divf %286, %287 : vector<8x96xf32>
    %289 = vector.extract_strided_slice %282 {offsets = [0, 96], sizes = [8, 64], strides = [1, 1]} : vector<8x160xf32> to vector<8x64xf32>
    %290 = math.tanh %289 : vector<8x64xf32>
    %291 = vector.extract_strided_slice %288 {offsets = [0, 0], sizes = [8, 32], strides = [1, 1]} : vector<8x96xf32> to vector<8x32xf32>
    %292 = vector.extract_strided_slice %288 {offsets = [0, 32], sizes = [8, 32], strides = [1, 1]} : vector<8x96xf32> to vector<8x32xf32>
    %293 = vector.extract_strided_slice %288 {offsets = [0, 64], sizes = [8, 32], strides = [1, 1]} : vector<8x96xf32> to vector<8x32xf32>
    %294 = vector.extract_strided_slice %290 {offsets = [0, 0], sizes = [8, 32], strides = [1, 1]} : vector<8x64xf32> to vector<8x32xf32>
    %295 = vector.extract_strided_slice %290 {offsets = [0, 32], sizes = [8, 32], strides = [1, 1]} : vector<8x64xf32> to vector<8x32xf32>
    %c0_126 = arith.constant 0 : index
    %c0_127 = arith.constant 0 : index
    %296 = vector.load %arg6[%c0_126, %c0_127] : memref<8x32xf32, #tpu.memory_space<vmem>>, vector<8x32xf32>
    %cst_128 = arith.constant 1.000000e+00 : f32
    %297 = vector.broadcast %cst_128 : f32 to vector<8x1xf32>
    %298 = arith.addf %278, %297 : vector<8x1xf32>
    %299 = tpu.reciprocal %298 {approx = true} : vector<8x1xf32> -> vector<8x1xf32>
    %300 = arith.subf %296, %295 : vector<8x32xf32>
    %301 = vector.broadcast %299 : vector<8x1xf32> to vector<8x32xf32>
    %302 = arith.mulf %295, %301 : vector<8x32xf32>
    %303 = arith.addf %300, %302 : vector<8x32xf32>
    %304 = arith.mulf %291, %303 : vector<8x32xf32>
    %305 = arith.mulf %292, %294 : vector<8x32xf32>
    %306 = arith.addf %304, %305 : vector<8x32xf32>
    %307 = math.tanh %306 : vector<8x32xf32>
    %308 = arith.mulf %293, %307 : vector<8x32xf32>
    %c0_129 = arith.constant 0 : index
    %c0_130 = arith.constant 0 : index
    %309 = vector.load %arg6[%c0_129, %c0_130] : memref<8x32xf32, #tpu.memory_space<vmem>>, vector<8x32xf32>
    tpu.vector_store %arg6[%c0_129, %c0_130], %306 {strides = array<i32>} : memref<8x32xf32, #tpu.memory_space<vmem>>, vector<8x32xf32>,
    %310 = arith.truncf %308 : vector<8x32xf32> to vector<8x32xbf16>
    %c0_131 = arith.constant 0 : index
    %c16_132 = arith.constant 16 : index
    %311 = vector.load %arg5[%c0_131, %c16_132] : memref<8x96xbf16, #tpu.memory_space<vmem>>, vector<8x32xbf16>
    tpu.vector_store %arg5[%c0_131, %c16_132], %310 {strides = array<i32>} : memref<8x96xbf16, #tpu.memory_space<vmem>>, vector<8x32xbf16>,
    %312 = arith.truncf %306 : vector<8x32xf32> to vector<8x32xbf16>
    %c0_133 = arith.constant 0 : index
    %c48_134 = arith.constant 48 : index
    %313 = vector.load %arg5[%c0_133, %c48_134] : memref<8x96xbf16, #tpu.memory_space<vmem>>, vector<8x32xbf16>
    tpu.vector_store %arg5[%c0_133, %c48_134], %312 {strides = array<i32>} : memref<8x96xbf16, #tpu.memory_space<vmem>>, vector<8x32xbf16>,
    %c8_i32_135 = arith.constant 8 : i32
    %314 = arith.muli %arg1, %c8_i32_135 : i32
    %315 = arith.addi %314, %c6_i32 : i32
    %c12_i32_136 = arith.constant 12 : i32
    %316 = arith.cmpi sge, %315, %c12_i32_136 : i32
    %317 = arith.extui %316 : i1 to i32
    %c0_i32_137 = arith.constant 0 : i32
    %318 = arith.cmpi ne, %317, %c0_i32_137 : i32
    scf.if %318 {
      %c12_i32_159 = arith.constant 12 : i32
      %364 = arith.subi %315, %c12_i32_159 : i32
      %c0_i32_160 = arith.constant 0 : i32
      %365 = arith.maxsi %364, %c0_i32_160 : i32
      %366 = arith.index_cast %365 : i32 to index
      %c0_161 = arith.constant 0 : index
      %c0_162 = arith.constant 0 : index
      %367 = vector.load %arg4[%366, %c0_161, %c0_162] : memref<4x8x32xf32, #tpu.memory_space<vmem>>, vector<1x8x32xf32>
      %368 = vector.shape_cast %367 : vector<1x8x32xf32> to vector<8x32xf32>
      %369 = vector.shape_cast %308 : vector<8x32xf32> to vector<1x8x32xf32>
      tpu.vector_store %arg4[%366, %c0_161, %c0_162], %369 {strides = array<i32>} : memref<4x8x32xf32, #tpu.memory_space<vmem>>, vector<1x8x32xf32>,
    } else {
    }
    %c7_i32 = arith.constant 7 : i32
    %319 = arith.index_cast %c7_i32 : i32 to index
    %c0_138 = arith.constant 0 : index
    %c0_139 = arith.constant 0 : index
    %320 = vector.load %arg2[%319, %c0_138, %c0_139] : memref<8x8x17xf32, #tpu.memory_space<vmem>>, vector<1x8x17xf32>
    %321 = vector.shape_cast %320 : vector<1x8x17xf32> to vector<8x17xf32>
    %322 = vector.extract_strided_slice %321 {offsets = [0, 0], sizes = [8, 16], strides = [1, 1]} : vector<8x17xf32> to vector<8x16xf32>
    %323 = vector.extract_strided_slice %321 {offsets = [0, 16], sizes = [8, 1], strides = [1, 1]} : vector<8x17xf32> to vector<8x1xf32>
    %324 = arith.truncf %322 : vector<8x16xf32> to vector<8x16xbf16>
    %c0_140 = arith.constant 0 : index
    %c0_141 = arith.constant 0 : index
    %325 = vector.load %arg5[%c0_140, %c0_141] : memref<8x96xbf16, #tpu.memory_space<vmem>>, vector<8x16xbf16>
    tpu.vector_store %arg5[%c0_140, %c0_141], %324 {strides = array<i32>} : memref<8x96xbf16, #tpu.memory_space<vmem>>, vector<8x16xbf16>,
    %c0_142 = arith.constant 0 : index
    %c0_143 = arith.constant 0 : index
    %326 = vector.load %arg5[%c0_142, %c0_143] : memref<8x96xbf16, #tpu.memory_space<vmem>>, vector<8x96xbf16>
    %cst_144 = arith.constant dense<0.000000e+00> : vector<8x160xf32>
    %327 = tpu.matmul %326, %3, %cst_144 {dimension_numbers = #tpu.dot_dimension_numbers<[1], [0], [0], [1], [0, 0, 1, 1], [], []>} : vector<8x96xbf16>, vector<96x160xbf16>, vector<8x160xf32> -> vector<8x160xf32>
    %328 = vector.extract_strided_slice %327 {offsets = [0, 0], sizes = [8, 96], strides = [1, 1]} : vector<8x160xf32> to vector<8x96xf32>
    %329 = arith.negf %328 : vector<8x96xf32>
    %330 = math.exp %329 : vector<8x96xf32>
    %cst_145 = arith.constant 1.000000e+00 : f32
    %331 = vector.broadcast %cst_145 : f32 to vector<8x96xf32>
    %332 = arith.addf %331, %330 : vector<8x96xf32>
    %333 = arith.divf %331, %332 : vector<8x96xf32>
    %334 = vector.extract_strided_slice %327 {offsets = [0, 96], sizes = [8, 64], strides = [1, 1]} : vector<8x160xf32> to vector<8x64xf32>
    %335 = math.tanh %334 : vector<8x64xf32>
    %336 = vector.extract_strided_slice %333 {offsets = [0, 0], sizes = [8, 32], strides = [1, 1]} : vector<8x96xf32> to vector<8x32xf32>
    %337 = vector.extract_strided_slice %333 {offsets = [0, 32], sizes = [8, 32], strides = [1, 1]} : vector<8x96xf32> to vector<8x32xf32>
    %338 = vector.extract_strided_slice %333 {offsets = [0, 64], sizes = [8, 32], strides = [1, 1]} : vector<8x96xf32> to vector<8x32xf32>
    %339 = vector.extract_strided_slice %335 {offsets = [0, 0], sizes = [8, 32], strides = [1, 1]} : vector<8x64xf32> to vector<8x32xf32>
    %340 = vector.extract_strided_slice %335 {offsets = [0, 32], sizes = [8, 32], strides = [1, 1]} : vector<8x64xf32> to vector<8x32xf32>
    %c0_146 = arith.constant 0 : index
    %c0_147 = arith.constant 0 : index
    %341 = vector.load %arg6[%c0_146, %c0_147] : memref<8x32xf32, #tpu.memory_space<vmem>>, vector<8x32xf32>
    %cst_148 = arith.constant 1.000000e+00 : f32
    %342 = vector.broadcast %cst_148 : f32 to vector<8x1xf32>
    %343 = arith.addf %323, %342 : vector<8x1xf32>
    %344 = tpu.reciprocal %343 {approx = true} : vector<8x1xf32> -> vector<8x1xf32>
    %345 = arith.subf %341, %340 : vector<8x32xf32>
    %346 = vector.broadcast %344 : vector<8x1xf32> to vector<8x32xf32>
    %347 = arith.mulf %340, %346 : vector<8x32xf32>
    %348 = arith.addf %345, %347 : vector<8x32xf32>
    %349 = arith.mulf %336, %348 : vector<8x32xf32>
    %350 = arith.mulf %337, %339 : vector<8x32xf32>
    %351 = arith.addf %349, %350 : vector<8x32xf32>
    %352 = math.tanh %351 : vector<8x32xf32>
    %353 = arith.mulf %338, %352 : vector<8x32xf32>
    %c0_149 = arith.constant 0 : index
    %c0_150 = arith.constant 0 : index
    %354 = vector.load %arg6[%c0_149, %c0_150] : memref<8x32xf32, #tpu.memory_space<vmem>>, vector<8x32xf32>
    tpu.vector_store %arg6[%c0_149, %c0_150], %351 {strides = array<i32>} : memref<8x32xf32, #tpu.memory_space<vmem>>, vector<8x32xf32>,
    %355 = arith.truncf %353 : vector<8x32xf32> to vector<8x32xbf16>
    %c0_151 = arith.constant 0 : index
    %c16_152 = arith.constant 16 : index
    %356 = vector.load %arg5[%c0_151, %c16_152] : memref<8x96xbf16, #tpu.memory_space<vmem>>, vector<8x32xbf16>
    tpu.vector_store %arg5[%c0_151, %c16_152], %355 {strides = array<i32>} : memref<8x96xbf16, #tpu.memory_space<vmem>>, vector<8x32xbf16>,
    %357 = arith.truncf %351 : vector<8x32xf32> to vector<8x32xbf16>
    %c0_153 = arith.constant 0 : index
    %c48_154 = arith.constant 48 : index
    %358 = vector.load %arg5[%c0_153, %c48_154] : memref<8x96xbf16, #tpu.memory_space<vmem>>, vector<8x32xbf16>
    tpu.vector_store %arg5[%c0_153, %c48_154], %357 {strides = array<i32>} : memref<8x96xbf16, #tpu.memory_space<vmem>>, vector<8x32xbf16>,
    %c8_i32_155 = arith.constant 8 : i32
    %359 = arith.muli %arg1, %c8_i32_155 : i32
    %360 = arith.addi %359, %c7_i32 : i32
    %c12_i32_156 = arith.constant 12 : i32
    %361 = arith.cmpi sge, %360, %c12_i32_156 : i32
    %362 = arith.extui %361 : i1 to i32
    %c0_i32_157 = arith.constant 0 : i32
    %363 = arith.cmpi ne, %362, %c0_i32_157 : i32
    scf.if %363 {
      %c12_i32_159 = arith.constant 12 : i32
      %364 = arith.subi %360, %c12_i32_159 : i32
      %c0_i32_160 = arith.constant 0 : i32
      %365 = arith.maxsi %364, %c0_i32_160 : i32
      %366 = arith.index_cast %365 : i32 to index
      %c0_161 = arith.constant 0 : index
      %c0_162 = arith.constant 0 : index
      %367 = vector.load %arg4[%366, %c0_161, %c0_162] : memref<4x8x32xf32, #tpu.memory_space<vmem>>, vector<1x8x32xf32>
      %368 = vector.shape_cast %367 : vector<1x8x32xf32> to vector<8x32xf32>
      %369 = vector.shape_cast %353 : vector<8x32xf32> to vector<1x8x32xf32>
      tpu.vector_store %arg4[%366, %c0_161, %c0_162], %369 {strides = array<i32>} : memref<4x8x32xf32, #tpu.memory_space<vmem>>, vector<1x8x32xf32>,
    } else {
    }
    %c8_i32_158 = arith.constant 8 : i32
    return
  }
  func.func @transform_0(%arg0: i32, %arg1: i32) -> (i32, i32, i32) {
    %c0_i32 = arith.constant 0 : i32
    %c0_i32_0 = arith.constant 0 : i32
    return %arg1, %arg0, %c0_i32 : i32, i32, i32
  }
  func.func @transform_1(%arg0: i32, %arg1: i32) -> (i32, i32) {
    %c0_i32 = arith.constant 0 : i32
    %c0_i32_0 = arith.constant 0 : i32
    %c0_i32_1 = arith.constant 0 : i32
    return %c0_i32, %c0_i32_0 : i32, i32
  }
  func.func @transform_2(%arg0: i32, %arg1: i32) -> (i32, i32, i32) {
    %c0_i32 = arith.constant 0 : i32
    %c0_i32_0 = arith.constant 0 : i32
    %c0_i32_1 = arith.constant 0 : i32
    return %c0_i32, %arg0, %c0_i32_0 : i32, i32, i32
  }
}

</mosaic_0001>

<llo_original>
// kernel: tpu_custom_call.1
$region0: #{tpu_custom_call.1}
  #allocation0 [shape = 'u32[]', space=smem, size = 0x4, offset = 0x4, fixed_abs, tag = 'smem constant byte address 0x4 - core index']
  #allocation1 [shape = 'u32[72,128]{1,0:T(1,128)}', space=vmem, size = 0x9000, scoped, tag = 'internal scratch']
  #allocation2 [shape = 'bf16[8,96]{1,0:T(8,128)(2,1)}', space=vmem, size = 0x800, scoped, tag = 'scratch operand']
  #allocation3 [shape = 'f32[8,32]{1,0:T(8,128)}', space=vmem, size = 0x1000, scoped, tag = 'scratch operand']
  %s0 = inlined_call_operand.hbm [shape: f32[16,16,17], index: 0, kind: input, shape index: {}]
  %s1 = inlined_call_operand.vmem [shape: bf16[96,160], index: 1, kind: input, shape index: {}]
  %s2 = inlined_call_operand.hbm [shape: f32[4,16,32], index: 2, kind: output, shape index: {}]
  %s3 = sld [smem:[#allocation0]]
  $region81: #{tpu_custom_call.1} parent=0
    _
  %s5 = ssub.s32 1, %s3
  %s6 = scalar_select 0, %s5, %s3
  $region1: #{tpu_custom_call.1} parent=0
    #allocation4 [shape = 'u8[65536]{0}', space=vmem, size = 0x10000, scoped, tag = 'input window, operand 0']
    #allocation5 [shape = 's32[2]{0}', space=sflag, size = 0x8, scoped, tag = 'scoped memory for tpu_custom_call.1']
    #allocation6 [shape = 's32[2]{0}', space=sflag, size = 0x8, scoped, tag = 'scoped memory for tpu_custom_call.1']
    #allocation7 [shape = 'u8[32768]{0}', space=vmem, size = 0x8000, scoped, tag = 'output window, operand 0']
    %7 = vsyncpa [#allocation5], 0
    %s8 = scalar_lea.sflag [#allocation5], 1
    %9 = vsyncpa %s8, 0
    %10 = vsyncpa [#allocation6], 0
    %s11 = scalar_lea.sflag [#allocation6], 1
    %12 = vsyncpa %s11, 0
    loop: start=0, step=1, limit=6
    $region2: #{tpu_custom_call.1} parent=1 // loop_pre_header
      _
    $region3: #{tpu_custom_call.1} parent=1 // loop_header
      %s14 = sphi 0, %s18
      %p15 = scmp.ge.s32.totalorder %s14, 6
      %s21 = sphi 0, %s33
      %s22 = sphi 0, %s29
      %s23 = sphi 0, %s21
      %s24 = sphi 0, %s22
      %s25 = sphi 0, %s23
      %s26 = sphi 0, %s24
      %s38 = sphi 0, %s40
      %s41 = sphi 0, %s38
      %s42 = sphi 0, %s41
      %s58 = sphi 0, %s42
      %s62 = sphi 0, %s62
      %s64 = sphi 0, %s62
      %s65 = sphi 0, %s64
      %s79 = sphi 0, %s65
      %s85 = sphi 0, %s87
      %s88 = sphi 0, %s85
      %s89 = sphi 0, %s88
      %s105 = sphi 0, %s89
    $region4: #{tpu_custom_call.1} parent=1 // loop_header_branch
      %17 = sbr.rel (%p15) target = $region8
    $region5: #{tpu_custom_call.1} parent=1 // loop_body
      %s19 = ssub.s32 %s14, 1
      %s20 = ssub.s32 %s14, 2
      %s27 = sadd.s32 1, %s22
      %p28 = scmp.ge.s32.totalorder %s27, 2
      %s29 = scalar_select %p28, 0, %s27
      %s30 = sadd.s32 1, %s21
      %s31 = scalar_select %p28, %s30, %s21
      %p32 = scmp.ge.s32.totalorder %s31, 2
      %s33 = scalar_select %p32, 0, %s31
      %s34 = ssub.s32 %s22, %s29
      %s35 = ssub.s32 %s21, %s33
      %s36 = sor.u32 %s34, %s35
      %p37 = scmp.eq.s32.totalorder %s36, 0
      %s39 = sadd.s32 %s38, 1
      %s40 = scalar_select %p37, %s38, %s39
      %p43 = pneg %p37
      %p44 = scmp.eq.s32.totalorder %s14, 3
      %p45 = por %p43, %p44
      %p46 = scmp.ne.s32.totalorder %s38, %s41
      %p47 = scmp.eq.s32.totalorder %s14, 0
      %p48 = por %p46, %p47
      %p49 = scmp.ne.s32.totalorder %s38, %s41
      %p50 = scmp.eq.s32.totalorder %s19, 3
      %p51 = por %p49, %p50
      %p52 = scmp.ne.s32.totalorder %s41, %s42
      %p53 = scmp.eq.s32.totalorder %s19, 0
      %p54 = por %p52, %p53
      %p55 = scmp.ne.s32.totalorder %s41, %s42
      %p56 = scmp.eq.s32.totalorder %s20, 3
      %p57 = por %p55, %p56
      %p59 = scmp.ne.s32.totalorder %s42, %s58
      %p60 = scmp.eq.s32.totalorder %s20, 0
      %p61 = por %p59, %p60
      %s63 = sadd.s32 %s62, 1
      %p66 = scmp.eq.s32.totalorder %s14, 3
      %p67 = scmp.ne.s32.totalorder %s62, %s64
      %p68 = scmp.eq.s32.totalorder %s14, 0
      %p69 = por %p67, %p68
      %p70 = scmp.ne.s32.totalorder %s62, %s64
      %p71 = scmp.eq.s32.totalorder %s19, 3
      %p72 = por %p70, %p71
      %p73 = scmp.ne.s32.totalorder %s64, %s65
      %p74 = scmp.eq.s32.totalorder %s19, 0
      %p75 = por %p73, %p74
      %p76 = scmp.ne.s32.totalorder %s64, %s65
      %p77 = scmp.eq.s32.totalorder %s20, 3
      %p78 = por %p76, %p77
      %p80 = scmp.ne.s32.totalorder %s65, %s79
      %p81 = scmp.eq.s32.totalorder %s20, 0
      %p82 = por %p80, %p81
      %s83 = ssub.s32 %s21, %s33
      %p84 = scmp.eq.s32.totalorder %s83, 0
      %s86 = sadd.s32 %s85, 1
      %s87 = scalar_select %p84, %s85, %s86
      %p90 = pneg %p84
      %p91 = scmp.eq.s32.totalorder %s14, 3
      %p92 = por %p90, %p91
      %p93 = scmp.ne.s32.totalorder %s85, %s88
      %p94 = scmp.eq.s32.totalorder %s14, 0
      %p95 = por %p93, %p94
      %p96 = scmp.ne.s32.totalorder %s85, %s88
      %p97 = scmp.eq.s32.totalorder %s19, 3
      %p98 = por %p96, %p97
      %p99 = scmp.ne.s32.totalorder %s88, %s89
      %p100 = scmp.eq.s32.totalorder %s19, 0
      %p101 = por %p99, %p100
      %p102 = scmp.ne.s32.totalorder %s88, %s89
      %p103 = scmp.eq.s32.totalorder %s20, 3
      %p104 = por %p102, %p103
      %p106 = scmp.ne.s32.totalorder %s89, %s105
      %p107 = scmp.eq.s32.totalorder %s20, 0
      %p108 = por %p106, %p107
      %p109 = scmp.le.s32.totalorder 1, %s14
      %p110 = scmp.lt.s32.totalorder %s14, 5
      %p111 = pnand %p109, %p110
      %p112 = pneg %p111
      // Predicated region
      $region9: #{tpu_custom_call.1} parent=5 // pred_check
        _
      $region10: #{tpu_custom_call.1} parent=5 // pred_check_branch
        %114 = sbr.rel (%p111) target = $region12
      $region11: #{tpu_custom_call.1} parent=5 // pred_region
        %s115 = ssub.s32 %s14, 1
        // Predicated region
        $region13: #{tpu_custom_call.1} parent=11 // pred_check
          %p116 = pneg %p75
        $region14: #{tpu_custom_call.1} parent=11 // pred_check_branch
          %118 = sbr.rel (%p116) target = $region16
        $region15: #{tpu_custom_call.1} parent=11 // pred_region
          _
        $region16: #{tpu_custom_call.1} parent=11 // pred_fallthru
          _
      $region12: #{tpu_custom_call.1} parent=5 // pred_fallthru
        _
      %p119 = scmp.lt.s32.totalorder %s14, 4
      // Predicated region
      $region17: #{tpu_custom_call.1} parent=5 // pred_check
        %p120 = pneg %p119
      $region18: #{tpu_custom_call.1} parent=5 // pred_check_branch
        %122 = sbr.rel (%p120) target = $region20
      $region19: #{tpu_custom_call.1} parent=5 // pred_region
        // Predicated region
        $region21: #{tpu_custom_call.1} parent=19 // pred_check
          %p123 = pneg %p48
        $region22: #{tpu_custom_call.1} parent=19 // pred_check_branch
          %125 = sbr.rel (%p123) target = $region24
        $region23: #{tpu_custom_call.1} parent=19 // pred_region
          %s126 = sand.u32 %s38, 1
          %s127 = scalar_lea.sflag [#allocation5], %s126
          %s128 = sand.u32 %s38, 1
          %s129 = smul.addr %s128, 64
          %s130 = scalar_lea.vmem [#allocation4], %s129
          %s131 = smul.u32 8, %s22
          %133 = vsyncadd %s127, 0
          %s134 = smul.addr %s131, 2
          %s135 = sadd.s32 %s21, %s134
          %s136 = smul.addr %s135, 8
          %s137 = scalar_lea.hbm %s0, %s136
          %s138 = sshll.u32 %s137, 4
          %s139 = int_to_ptr.hbm [resolvable:$true] %s138
          %s140 = sshll.u32 %s130, 4
          %s141 = int_to_ptr.vmem [resolvable:$true] %s140
          %146 = dma.hbm_to_vmem [thread:$0]  %s139, 1024, %s141, %s127, 256, 128, 8
        $region24: #{tpu_custom_call.1} parent=19 // pred_fallthru
          _
      $region20: #{tpu_custom_call.1} parent=5 // pred_fallthru
        _
      %p147 = scmp.le.s32.totalorder 1, %s14
      %p148 = scmp.lt.s32.totalorder %s14, 5
      %p149 = pnand %p147, %p148
      %p150 = pneg %p149
      // Predicated region
      $region25: #{tpu_custom_call.1} parent=5 // pred_check
        _
      $region26: #{tpu_custom_call.1} parent=5 // pred_check_branch
        %152 = sbr.rel (%p149) target = $region28
      $region27: #{tpu_custom_call.1} parent=5 // pred_region
        %s153 = ssub.s32 %s14, 1
        %s154 = sand.u32 %s41, 1
        %s155 = scalar_lea.sflag [#allocation5], %s154
        %s156 = sand.u32 %s41, 1
        %s157 = smul.addr %s156, 64
        %s158 = scalar_lea.vmem [#allocation4], %s157
        // Predicated region
        $region29: #{tpu_custom_call.1} parent=27 // pred_check
          %p159 = pneg %p54
        $region30: #{tpu_custom_call.1} parent=27 // pred_check_branch
          %161 = sbr.rel (%p159) target = $region32
        $region31: #{tpu_custom_call.1} parent=27 // pred_region
          %163 = dma.done %s155, 1024
        $region32: #{tpu_custom_call.1} parent=27 // pred_fallthru
          _
        %s164 = sand.u32 %s41, 1
        %s165 = scalar_lea.sflag [#allocation5], %s164
        %s166 = sand.u32 %s41, 1
        %s167 = smul.addr %s166, 64
        %s168 = scalar_lea.vmem [#allocation4], %s167
        %p169 = pneg %p54
        %p170 = pneg %p51
        %p171 = pneg %p75
        %p172 = pneg %p72
        %p173 = pneg %p101
        %p174 = pneg %p98
        %s175 = sand.u32 %s88, 1
        %s176 = scalar_lea.sflag [#allocation6], %s175
        %s177 = sand.u32 %s88, 1
        %s178 = smul.addr %s177, 32
        %s179 = scalar_lea.vmem [#allocation7], %s178
        %s180 = smul.u32 8, %s24
        %p183 = scmp.eq.s32.totalorder %s24, 0
        // Predicated region
        $region33: #{tpu_custom_call.1} parent=27 // pred_check
          %p184 = pneg %p183
        $region34: #{tpu_custom_call.1} parent=27 // pred_check_branch
          %186 = sbr.rel (%p184) target = $region36
        $region35: #{tpu_custom_call.1} parent=27 // pred_region
          %vm187 = vcmask 781312
          %188 = vst.msk [vmem:[#allocation2] sm:$0xf] %vm187, 0
          %vm189 = vcmask 659072
          %190 = vst.msk [vmem:[#allocation2] sm:$0xf] %vm189, 1065369472
          %vm191 = vcmask 261120
          %192 = vst.msk [vmem:[#allocation3] sm:$0xff] %vm191, 0.0
          %193 = vst.msk [vmem:[%s179] sm:$0xff] %vm191, 0.0
          %194 = vst.msk [vmem:[%s179 + $0x8] sm:$0xff] %vm191, 0.0
          %195 = vst.msk [vmem:[%s179 + $0x10] sm:$0xff] %vm191, 0.0
          %196 = vst.msk [vmem:[%s179 + $0x18] sm:$0xff] %vm191, 0.0
        $region36: #{tpu_custom_call.1} parent=27 // pred_fallthru
          _
        %v197 = vld [vmem:[%s1] sm:$0xff]
        %v198 = vld [vmem:[%s1 + $0x8] sm:$0xff]
        %v199 = vld [vmem:[%s1 + $0x10] sm:$0xff]
        %v200 = vld [vmem:[%s1 + $0x18] sm:$0xff]
        %v201 = vld [vmem:[%s1 + $0x20] sm:$0xff]
        %v202 = vld [vmem:[%s1 + $0x28] sm:$0xff]
        %v203 = vld [vmem:[%s1 + $0x30] sm:$0xff]
        %v204 = vld [vmem:[%s1 + $0x38] sm:$0xff]
        %v205 = vld [vmem:[%s1 + $0x40] sm:$0xff]
        %v206 = vld [vmem:[%s1 + $0x48] sm:$0xff]
        %v207 = vld [vmem:[%s1 + $0x50] sm:$0xff]
        %v208 = vld [vmem:[%s1 + $0x58] sm:$0xff]
        %v209 = vld [vmem:[%s158] sm:$0xff]
        %v210 = vpack.c.bf16 %v209, %v209
        %vm211 = vcmask 125952
        %212 = vst.msk [vmem:[#allocation2] sm:$0xf] %vm211, %v210
        %v213 = vld [vmem:[#allocation2] sm:$0xf]
        %v226 = vunpack.c.l.b16 %v197
        %v227 = vunpack.c.h.b16 %v197
        %v228 = vunpack.c.l.b16 %v198
        %v229 = vunpack.c.h.b16 %v198
        %v230 = vunpack.c.l.b16 %v199
        %v231 = vunpack.c.h.b16 %v199
        %v232 = vunpack.c.l.b16 %v200
        %v233 = vunpack.c.h.b16 %v200
        %v234 = vunpack.c.l.b16 %v201
        %v235 = vunpack.c.h.b16 %v201
        %v236 = vunpack.c.l.b16 %v202
        %v237 = vunpack.c.h.b16 %v202
        %v238 = vunpack.c.l.b16 %v203
        %v239 = vunpack.c.h.b16 %v203
        %v240 = vunpack.c.l.b16 %v204
        %v241 = vunpack.c.h.b16 %v204
        %v242 = vunpack.c.l.b16 %v205
        %v243 = vunpack.c.h.b16 %v205
        %v244 = vunpack.c.l.b16 %v206
        %v245 = vunpack.c.h.b16 %v206
        %v246 = vunpack.c.l.b16 %v207
        %v247 = vunpack.c.h.b16 %v207
        %v248 = vunpack.c.l.b16 %v208
        %v249 = vunpack.c.h.b16 %v208
        %v250 = vpack.c.b16 %v228, %v226
        %v251 = vpack.c.b16 %v229, %v227
        %v252 = vpack.c.b16 %v232, %v230
        %v253 = vpack.c.b16 %v233, %v231
        %v254 = vpack.c.b16 %v236, %v234
        %v255 = vpack.c.b16 %v237, %v235
        %v256 = vpack.c.b16 %v240, %v238
        %v257 = vpack.c.b16 %v241, %v239
        %v258 = vpack.c.b16 %v244, %v242
        %v259 = vpack.c.b16 %v245, %v243
        %v260 = vpack.c.b16 %v248, %v246
        %v261 = vpack.c.b16 %v249, %v247
        %vm274 = vcmask 785408
        %v276 = vsel %vm274, %v213, 0
        %278 = vmatpush.bf16.msra.mxu0 0
        %279 = vmatpush.bf16.msra.mxu0 0
        %280 = vmatpush.bf16.msra.mxu0 %v260
        %281 = vmatpush.bf16.msra.mxu0 %v258
        %282 = vmatpush.bf16.msra.mxu0 %v256
        %283 = vmatpush.bf16.msra.mxu0 %v254
        %284 = vmatpush.bf16.msra.mxu0 %v252
        %285 = vmatpush.bf16.msra.mxu0 %v250
        %286 = vmatmul.bf16.gmra.mxu0 %v276
        %v287 = vpop.f32.mrf.mxu0
        %v288 = vadd.f32 0.0, %v287
        %v289 = vpop.f32.mrf.mxu0
        %290 = vdwg.mxu0
        %291 = vmatpush.bf16.msra.mxu0 0
        %292 = vmatpush.bf16.msra.mxu0 0
        %293 = vmatpush.bf16.msra.mxu0 %v261
        %294 = vmatpush.bf16.msra.mxu0 %v259
        %295 = vmatpush.bf16.msra.mxu0 %v257
        %296 = vmatpush.bf16.msra.mxu0 %v255
        %297 = vmatpush.bf16.msra.mxu0 %v253
        %298 = vmatpush.bf16.msra.mxu0 %v251
        %299 = vmatmul.bf16.gmra.mxu0 %v276
        %v300 = vpop.f32.mrf.mxu0
        %v301 = vadd.f32 0.0, %v300
        %v302 = vpop.f32.mrf.mxu0
        %303 = vdwg.mxu0
        %v304 = vxor.u32 %v288, 2147483648
        %v305 = vmul.f32 %v304, 1.442695
        %v306 = vpow.pop %v305
        %v307 = vadd.f32 %v306, 1.0
        %v308 = vrcp.pop %v307
        %v309 = vmul.f32 %v307, %v308
        %v310 = vsub.f32 1.0, %v309
        %v311 = vmul.f32 %v308, %v310
        %v312 = vadd.f32 %v308, %v311
        %vm313 = vweird.f32 %v307
        %vm314 = vweird.f32 %v308
        %vm315 = vmor %vm313, %vm314
        %v316 = vsel %vm315, %v308, %v312
        %v317 = vand.u32 2147483647, %v307
        %vm318 = vcmp.eq.f32.partialorder %v317, 8.507059e+37
        %v319 = vand.u32 %v307, 2147483648
        %v320 = vor.u32 1.1754944e-38, %v319
        %v321 = vsel %vm318, %v320, %v316
        %v322 = vmul.f32 1.0, %v321
        %v323 = vtanh.pop %v288
        %v324 = vtanh.pop %v301
        %v325 = vld [vmem:[#allocation3] sm:$0xff]
        %v326 = vadd.f32 %v209, 1.0
        %v327 = vrcp.pop %v326
        %v328 = vsub.f32 %v325, %v324
        %330 = vset.pattern.permute.xlu0 16
        %331 = vperm.xlu0 %330, %v327
        %v332 = vpop.permute.xlu0 %331
        %v334 = vmul.f32 %v324, %v332
        %v335 = vadd.f32 %v328, %v334
        %v336 = vmul.f32 %v322, %v335
        %338 = vrot.lane.b32.xlu0 %v323, 64
        %v339 = vpop.permute.xlu0 %338
        %v341 = vmul.f32 %v322, %v339
        %343 = vrot.lane.b32.xlu0 %v341, 96
        %v344 = vpop.permute.xlu0 %343
        %v346 = vadd.f32 %v336, %v344
        %v347 = vtanh.pop %v346
        %349 = vrot.lane.b32.xlu0 %v347, 64
        %v350 = vpop.permute.xlu0 %349
        %v352 = vmul.f32 %v322, %v350
        %vm353 = vcmask 261120
        %354 = vst.msk [vmem:[#allocation3] sm:$0xff] %vm353, %v346
        %v355 = vpack.c.bf16 %v352, %v352
        %357 = vrot.lane.b32.xlu0 %v355, 80
        %v358 = vpop.permute.xlu0 %357
        %vm360 = vcmask 388224
        %361 = vst.msk [vmem:[#allocation2] sm:$0xf] %vm360, %v358
        %v362 = vpack.c.bf16 %v346, %v346
        %364 = vrot.lane.b32.xlu0 %v362, 48
        %v365 = vpop.permute.xlu0 %364
        %vm367 = vcmask 650624
        %368 = vst.msk [vmem:[#allocation2] sm:$0xf] %vm367, %v365
        %s369 = smul.u32 %s24, 8
        %p370 = scmp.ge.s32.totalorder %s369, 12
        // Predicated region
        $region37: #{tpu_custom_call.1} parent=27 // pred_check
          %p371 = pneg %p370
        $region38: #{tpu_custom_call.1} parent=27 // pred_check_branch
          %373 = sbr.rel (%p371) target = $region40
        $region39: #{tpu_custom_call.1} parent=27 // pred_region
          %s374 = sadd.s32 %s369, 4294967284
          %p375 = scmp.gt.s32.totalorder %s374, 0
          %s376 = scalar_select %p375, %s374, 0
          %378 = vrot.lane.b32.xlu0 %v352, 64
          %v379 = vpop.permute.xlu0 %378
          %s381 = smul.u32 %s376, 8
          %s382 = scalar_lea.vmem %s179, %s381 [#allocation7]
          %383 = vst.msk [vmem:[%s382] sm:$0xff] %vm353, %v379
        $region40: #{tpu_custom_call.1} parent=27 // pred_fallthru
          _
        %s384 = scalar_lea.vmem %s158, 8 [#allocation4]
        %v385 = vld [vmem:[%s384] sm:$0xff]
        %v386 = vpack.c.bf16 %v385, %v385
        %387 = vst.msk [vmem:[#allocation2] sm:$0xf] %vm211, %v386
        %v388 = vld [vmem:[#allocation2] sm:$0xf]
        %v390 = vsel %vm274, %v388, 0
        %392 = vmatpush.bf16.msra.mxu0 0
        %393 = vmatpush.bf16.msra.mxu0 0
        %394 = vmatpush.bf16.msra.mxu0 %v260
        %395 = vmatpush.bf16.msra.mxu0 %v258
        %396 = vmatpush.bf16.msra.mxu0 %v256
        %397 = vmatpush.bf16.msra.mxu0 %v254
        %398 = vmatpush.bf16.msra.mxu0 %v252
        %399 = vmatpush.bf16.msra.mxu0 %v250
        %400 = vmatmul.bf16.gmra.mxu0 %v390
        %v401 = vpop.f32.mrf.mxu0
        %v402 = vadd.f32 0.0, %v401
        %v403 = vpop.f32.mrf.mxu0
        %404 = vdwg.mxu0
        %405 = vmatpush.bf16.msra.mxu0 0
        %406 = vmatpush.bf16.msra.mxu0 0
        %407 = vmatpush.bf16.msra.mxu0 %v261
        %408 = vmatpush.bf16.msra.mxu0 %v259
        %409 = vmatpush.bf16.msra.mxu0 %v257
        %410 = vmatpush.bf16.msra.mxu0 %v255
        %411 = vmatpush.bf16.msra.mxu0 %v253
        %412 = vmatpush.bf16.msra.mxu0 %v251
        %413 = vmatmul.bf16.gmra.mxu0 %v390
        %v414 = vpop.f32.mrf.mxu0
        %v415 = vadd.f32 0.0, %v414
        %v416 = vpop.f32.mrf.mxu0
        %417 = vdwg.mxu0
        %v418 = vxor.u32 %v402, 2147483648
        %v419 = vmul.f32 %v418, 1.442695
        %v420 = vpow.pop %v419
        %v421 = vadd.f32 %v420, 1.0
        %v422 = vrcp.pop %v421
        %v423 = vmul.f32 %v421, %v422
        %v424 = vsub.f32 1.0, %v423
        %v425 = vmul.f32 %v422, %v424
        %v426 = vadd.f32 %v422, %v425
        %vm427 = vweird.f32 %v421
        %vm428 = vweird.f32 %v422
        %vm429 = vmor %vm427, %vm428
        %v430 = vsel %vm429, %v422, %v426
        %v431 = vand.u32 2147483647, %v421
        %vm432 = vcmp.eq.f32.partialorder %v431, 8.507059e+37
        %v433 = vand.u32 %v421, 2147483648
        %v434 = vor.u32 1.1754944e-38, %v433
        %v435 = vsel %vm432, %v434, %v430
        %v436 = vmul.f32 1.0, %v435
        %v437 = vtanh.pop %v402
        %v438 = vtanh.pop %v415
        %v439 = vld [vmem:[#allocation3] sm:$0xff]
        %v440 = vadd.f32 %v385, 1.0
        %v441 = vrcp.pop %v440
        %v442 = vsub.f32 %v439, %v438
        %444 = vset.pattern.permute.xlu0 16
        %445 = vperm.xlu0 %444, %v441
        %v446 = vpop.permute.xlu0 %445
        %v448 = vmul.f32 %v438, %v446
        %v449 = vadd.f32 %v442, %v448
        %v450 = vmul.f32 %v436, %v449
        %452 = vrot.lane.b32.xlu0 %v437, 64
        %v453 = vpop.permute.xlu0 %452
        %v455 = vmul.f32 %v436, %v453
        %457 = vrot.lane.b32.xlu0 %v455, 96
        %v458 = vpop.permute.xlu0 %457
        %v460 = vadd.f32 %v450, %v458
        %v461 = vtanh.pop %v460
        %463 = vrot.lane.b32.xlu0 %v461, 64
        %v464 = vpop.permute.xlu0 %463
        %v466 = vmul.f32 %v436, %v464
        %467 = vst.msk [vmem:[#allocation3] sm:$0xff] %vm353, %v460
        %v468 = vpack.c.bf16 %v466, %v466
        %470 = vrot.lane.b32.xlu0 %v468, 80
        %v471 = vpop.permute.xlu0 %470
        %473 = vst.msk [vmem:[#allocation2] sm:$0xf] %vm360, %v471
        %v474 = vpack.c.bf16 %v460, %v460
        %476 = vrot.lane.b32.xlu0 %v474, 48
        %v477 = vpop.permute.xlu0 %476
        %479 = vst.msk [vmem:[#allocation2] sm:$0xf] %vm367, %v477
        %s480 = sadd.s32 %s369, 1
        %p481 = scmp.ge.s32.totalorder %s480, 12
        // Predicated region
        $region41: #{tpu_custom_call.1} parent=27 // pred_check
          %p482 = pneg %p481
        $region42: #{tpu_custom_call.1} parent=27 // pred_check_branch
          %484 = sbr.rel (%p482) target = $region44
        $region43: #{tpu_custom_call.1} parent=27 // pred_region
          %s485 = sadd.s32 %s369, 4294967285
          %p486 = scmp.gt.s32.totalorder %s485, 0
          %s487 = scalar_select %p486, %s485, 0
          %489 = vrot.lane.b32.xlu0 %v466, 64
          %v490 = vpop.permute.xlu0 %489
          %s492 = smul.u32 %s487, 8
          %s493 = scalar_lea.vmem %s179, %s492 [#allocation7]
          %494 = vst.msk [vmem:[%s493] sm:$0xff] %vm353, %v490
        $region44: #{tpu_custom_call.1} parent=27 // pred_fallthru
          _
        %s495 = scalar_lea.vmem %s158, 16 [#allocation4]
        %v496 = vld [vmem:[%s495] sm:$0xff]
        %v497 = vpack.c.bf16 %v496, %v496
        %498 = vst.msk [vmem:[#allocation2] sm:$0xf] %vm211, %v497
        %v499 = vld [vmem:[#allocation2] sm:$0xf]
        %v501 = vsel %vm274, %v499, 0
        %503 = vmatpush.bf16.msra.mxu0 0
        %504 = vmatpush.bf16.msra.mxu0 0
        %505 = vmatpush.bf16.msra.mxu0 %v260
        %506 = vmatpush.bf16.msra.mxu0 %v258
        %507 = vmatpush.bf16.msra.mxu0 %v256
        %508 = vmatpush.bf16.msra.mxu0 %v254
        %509 = vmatpush.bf16.msra.mxu0 %v252
        %510 = vmatpush.bf16.msra.mxu0 %v250
        %511 = vmatmul.bf16.gmra.mxu0 %v501
        %v512 = vpop.f32.mrf.mxu0
        %v513 = vadd.f32 0.0, %v512
        %v514 = vpop.f32.mrf.mxu0
        %515 = vdwg.mxu0
        %516 = vmatpush.bf16.msra.mxu0 0
        %517 = vmatpush.bf16.msra.mxu0 0
        %518 = vmatpush.bf16.msra.mxu0 %v261
        %519 = vmatpush.bf16.msra.mxu0 %v259
        %520 = vmatpush.bf16.msra.mxu0 %v257
        %521 = vmatpush.bf16.msra.mxu0 %v255
        %522 = vmatpush.bf16.msra.mxu0 %v253
        %523 = vmatpush.bf16.msra.mxu0 %v251
        %524 = vmatmul.bf16.gmra.mxu0 %v501
        %v525 = vpop.f32.mrf.mxu0
        %v526 = vadd.f32 0.0, %v525
        %v527 = vpop.f32.mrf.mxu0
        %528 = vdwg.mxu0
        %v529 = vxor.u32 %v513, 2147483648
        %v530 = vmul.f32 %v529, 1.442695
        %v531 = vpow.pop %v530
        %v532 = vadd.f32 %v531, 1.0
        %v533 = vrcp.pop %v532
        %v534 = vmul.f32 %v532, %v533
        %v535 = vsub.f32 1.0, %v534
        %v536 = vmul.f32 %v533, %v535
        %v537 = vadd.f32 %v533, %v536
        %vm538 = vweird.f32 %v532
        %vm539 = vweird.f32 %v533
        %vm540 = vmor %vm538, %vm539
        %v541 = vsel %vm540, %v533, %v537
        %v542 = vand.u32 2147483647, %v532
        %vm543 = vcmp.eq.f32.partialorder %v542, 8.507059e+37
        %v544 = vand.u32 %v532, 2147483648
        %v545 = vor.u32 1.1754944e-38, %v544
        %v546 = vsel %vm543, %v545, %v541
        %v547 = vmul.f32 1.0, %v546
        %v548 = vtanh.pop %v513
        %v549 = vtanh.pop %v526
        %v550 = vld [vmem:[#allocation3] sm:$0xff]
        %v551 = vadd.f32 %v496, 1.0
        %v552 = vrcp.pop %v551
        %v553 = vsub.f32 %v550, %v549
        %555 = vset.pattern.permute.xlu0 16
        %556 = vperm.xlu0 %555, %v552
        %v557 = vpop.permute.xlu0 %556
        %v559 = vmul.f32 %v549, %v557
        %v560 = vadd.f32 %v553, %v559
        %v561 = vmul.f32 %v547, %v560
        %563 = vrot.lane.b32.xlu0 %v548, 64
        %v564 = vpop.permute.xlu0 %563
        %v566 = vmul.f32 %v547, %v564
        %568 = vrot.lane.b32.xlu0 %v566, 96
        %v569 = vpop.permute.xlu0 %568
        %v571 = vadd.f32 %v561, %v569
        %v572 = vtanh.pop %v571
        %574 = vrot.lane.b32.xlu0 %v572, 64
        %v575 = vpop.permute.xlu0 %574
        %v577 = vmul.f32 %v547, %v575
        %578 = vst.msk [vmem:[#allocation3] sm:$0xff] %vm353, %v571
        %v579 = vpack.c.bf16 %v577, %v577
        %581 = vrot.lane.b32.xlu0 %v579, 80
        %v582 = vpop.permute.xlu0 %581
        %584 = vst.msk [vmem:[#allocation2] sm:$0xf] %vm360, %v582
        %v585 = vpack.c.bf16 %v571, %v571
        %587 = vrot.lane.b32.xlu0 %v585, 48
        %v588 = vpop.permute.xlu0 %587
        %590 = vst.msk [vmem:[#allocation2] sm:$0xf] %vm367, %v588
        %s591 = sadd.s32 %s369, 2
        %p592 = scmp.ge.s32.totalorder %s591, 12
        // Predicated region
        $region45: #{tpu_custom_call.1} parent=27 // pred_check
          %p593 = pneg %p592
        $region46: #{tpu_custom_call.1} parent=27 // pred_check_branch
          %595 = sbr.rel (%p593) target = $region48
        $region47: #{tpu_custom_call.1} parent=27 // pred_region
          %s596 = sadd.s32 %s369, 4294967286
          %p597 = scmp.gt.s32.totalorder %s596, 0
          %s598 = scalar_select %p597, %s596, 0
          %600 = vrot.lane.b32.xlu0 %v577, 64
          %v601 = vpop.permute.xlu0 %600
          %s603 = smul.u32 %s598, 8
          %s604 = scalar_lea.vmem %s179, %s603 [#allocation7]
          %605 = vst.msk [vmem:[%s604] sm:$0xff] %vm353, %v601
        $region48: #{tpu_custom_call.1} parent=27 // pred_fallthru
          _
        %s606 = scalar_lea.vmem %s158, 24 [#allocation4]
        %v607 = vld [vmem:[%s606] sm:$0xff]
        %v608 = vpack.c.bf16 %v607, %v607
        %609 = vst.msk [vmem:[#allocation2] sm:$0xf] %vm211, %v608
        %v610 = vld [vmem:[#allocation2] sm:$0xf]
        %v612 = vsel %vm274, %v610, 0
        %614 = vmatpush.bf16.msra.mxu0 0
        %615 = vmatpush.bf16.msra.mxu0 0
        %616 = vmatpush.bf16.msra.mxu0 %v260
        %617 = vmatpush.bf16.msra.mxu0 %v258
        %618 = vmatpush.bf16.msra.mxu0 %v256
        %619 = vmatpush.bf16.msra.mxu0 %v254
        %620 = vmatpush.bf16.msra.mxu0 %v252
        %621 = vmatpush.bf16.msra.mxu0 %v250
        %622 = vmatmul.bf16.gmra.mxu0 %v612
        %v623 = vpop.f32.mrf.mxu0
        %v624 = vadd.f32 0.0, %v623
        %v625 = vpop.f32.mrf.mxu0
        %626 = vdwg.mxu0
        %627 = vmatpush.bf16.msra.mxu0 0
        %628 = vmatpush.bf16.msra.mxu0 0
        %629 = vmatpush.bf16.msra.mxu0 %v261
        %630 = vmatpush.bf16.msra.mxu0 %v259
        %631 = vmatpush.bf16.msra.mxu0 %v257
        %632 = vmatpush.bf16.msra.mxu0 %v255
        %633 = vmatpush.bf16.msra.mxu0 %v253
        %634 = vmatpush.bf16.msra.mxu0 %v251
        %635 = vmatmul.bf16.gmra.mxu0 %v612
        %v636 = vpop.f32.mrf.mxu0
        %v637 = vadd.f32 0.0, %v636
        %v638 = vpop.f32.mrf.mxu0
        %639 = vdwg.mxu0
        %v640 = vxor.u32 %v624, 2147483648
        %v641 = vmul.f32 %v640, 1.442695
        %v642 = vpow.pop %v641
        %v643 = vadd.f32 %v642, 1.0
        %v644 = vrcp.pop %v643
        %v645 = vmul.f32 %v643, %v644
        %v646 = vsub.f32 1.0, %v645
        %v647 = vmul.f32 %v644, %v646
        %v648 = vadd.f32 %v644, %v647
        %vm649 = vweird.f32 %v643
        %vm650 = vweird.f32 %v644
        %vm651 = vmor %vm649, %vm650
        %v652 = vsel %vm651, %v644, %v648
        %v653 = vand.u32 2147483647, %v643
        %vm654 = vcmp.eq.f32.partialorder %v653, 8.507059e+37
        %v655 = vand.u32 %v643, 2147483648
        %v656 = vor.u32 1.1754944e-38, %v655
        %v657 = vsel %vm654, %v656, %v652
        %v658 = vmul.f32 1.0, %v657
        %v659 = vtanh.pop %v624
        %v660 = vtanh.pop %v637
        %v661 = vld [vmem:[#allocation3] sm:$0xff]
        %v662 = vadd.f32 %v607, 1.0
        %v663 = vrcp.pop %v662
        %v664 = vsub.f32 %v661, %v660
        %666 = vset.pattern.permute.xlu0 16
        %667 = vperm.xlu0 %666, %v663
        %v668 = vpop.permute.xlu0 %667
        %v670 = vmul.f32 %v660, %v668
        %v671 = vadd.f32 %v664, %v670
        %v672 = vmul.f32 %v658, %v671
        %674 = vrot.lane.b32.xlu0 %v659, 64
        %v675 = vpop.permute.xlu0 %674
        %v677 = vmul.f32 %v658, %v675
        %679 = vrot.lane.b32.xlu0 %v677, 96
        %v680 = vpop.permute.xlu0 %679
        %v682 = vadd.f32 %v672, %v680
        %v683 = vtanh.pop %v682
        %685 = vrot.lane.b32.xlu0 %v683, 64
        %v686 = vpop.permute.xlu0 %685
        %v688 = vmul.f32 %v658, %v686
        %689 = vst.msk [vmem:[#allocation3] sm:$0xff] %vm353, %v682
        %v690 = vpack.c.bf16 %v688, %v688
        %692 = vrot.lane.b32.xlu0 %v690, 80
        %v693 = vpop.permute.xlu0 %692
        %695 = vst.msk [vmem:[#allocation2] sm:$0xf] %vm360, %v693
        %v696 = vpack.c.bf16 %v682, %v682
        %698 = vrot.lane.b32.xlu0 %v696, 48
        %v699 = vpop.permute.xlu0 %698
        %701 = vst.msk [vmem:[#allocation2] sm:$0xf] %vm367, %v699
        %s702 = sadd.s32 %s369, 3
        %p703 = scmp.ge.s32.totalorder %s702, 12
        // Predicated region
        $region49: #{tpu_custom_call.1} parent=27 // pred_check
          %p704 = pneg %p703
        $region50: #{tpu_custom_call.1} parent=27 // pred_check_branch
          %706 = sbr.rel (%p704) target = $region52
        $region51: #{tpu_custom_call.1} parent=27 // pred_region
          %s707 = sadd.s32 %s369, 4294967287
          %p708 = scmp.gt.s32.totalorder %s707, 0
          %s709 = scalar_select %p708, %s707, 0
          %711 = vrot.lane.b32.xlu0 %v688, 64
          %v712 = vpop.permute.xlu0 %711
          %s714 = smul.u32 %s709, 8
          %s715 = scalar_lea.vmem %s179, %s714 [#allocation7]
          %716 = vst.msk [vmem:[%s715] sm:$0xff] %vm353, %v712
        $region52: #{tpu_custom_call.1} parent=27 // pred_fallthru
          _
        %s717 = scalar_lea.vmem %s158, 32 [#allocation4]
        %v718 = vld [vmem:[%s717] sm:$0xff]
        %v719 = vpack.c.bf16 %v718, %v718
        %720 = vst.msk [vmem:[#allocation2] sm:$0xf] %vm211, %v719
        %v721 = vld [vmem:[#allocation2] sm:$0xf]
        %v723 = vsel %vm274, %v721, 0
        %725 = vmatpush.bf16.msra.mxu0 0
        %726 = vmatpush.bf16.msra.mxu0 0
        %727 = vmatpush.bf16.msra.mxu0 %v260
        %728 = vmatpush.bf16.msra.mxu0 %v258
        %729 = vmatpush.bf16.msra.mxu0 %v256
        %730 = vmatpush.bf16.msra.mxu0 %v254
        %731 = vmatpush.bf16.msra.mxu0 %v252
        %732 = vmatpush.bf16.msra.mxu0 %v250
        %733 = vmatmul.bf16.gmra.mxu0 %v723
        %v734 = vpop.f32.mrf.mxu0
        %v735 = vadd.f32 0.0, %v734
        %v736 = vpop.f32.mrf.mxu0
        %737 = vdwg.mxu0
        %738 = vmatpush.bf16.msra.mxu0 0
        %739 = vmatpush.bf16.msra.mxu0 0
        %740 = vmatpush.bf16.msra.mxu0 %v261
        %741 = vmatpush.bf16.msra.mxu0 %v259
        %742 = vmatpush.bf16.msra.mxu0 %v257
        %743 = vmatpush.bf16.msra.mxu0 %v255
        %744 = vmatpush.bf16.msra.mxu0 %v253
        %745 = vmatpush.bf16.msra.mxu0 %v251
        %746 = vmatmul.bf16.gmra.mxu0 %v723
        %v747 = vpop.f32.mrf.mxu0
        %v748 = vadd.f32 0.0, %v747
        %v749 = vpop.f32.mrf.mxu0
        %750 = vdwg.mxu0
        %v751 = vxor.u32 %v735, 2147483648
        %v752 = vmul.f32 %v751, 1.442695
        %v753 = vpow.pop %v752
        %v754 = vadd.f32 %v753, 1.0
        %v755 = vrcp.pop %v754
        %v756 = vmul.f32 %v754, %v755
        %v757 = vsub.f32 1.0, %v756
        %v758 = vmul.f32 %v755, %v757
        %v759 = vadd.f32 %v755, %v758
        %vm760 = vweird.f32 %v754
        %vm761 = vweird.f32 %v755
        %vm762 = vmor %vm760, %vm761
        %v763 = vsel %vm762, %v755, %v759
        %v764 = vand.u32 2147483647, %v754
        %vm765 = vcmp.eq.f32.partialorder %v764, 8.507059e+37
        %v766 = vand.u32 %v754, 2147483648
        %v767 = vor.u32 1.1754944e-38, %v766
        %v768 = vsel %vm765, %v767, %v763
        %v769 = vmul.f32 1.0, %v768
        %v770 = vtanh.pop %v735
        %v771 = vtanh.pop %v748
        %v772 = vld [vmem:[#allocation3] sm:$0xff]
        %v773 = vadd.f32 %v718, 1.0
        %v774 = vrcp.pop %v773
        %v775 = vsub.f32 %v772, %v771
        %777 = vset.pattern.permute.xlu0 16
        %778 = vperm.xlu0 %777, %v774
        %v779 = vpop.permute.xlu0 %778
        %v781 = vmul.f32 %v771, %v779
        %v782 = vadd.f32 %v775, %v781
        %v783 = vmul.f32 %v769, %v782
        %785 = vrot.lane.b32.xlu0 %v770, 64
        %v786 = vpop.permute.xlu0 %785
        %v788 = vmul.f32 %v769, %v786
        %790 = vrot.lane.b32.xlu0 %v788, 96
        %v791 = vpop.permute.xlu0 %790
        %v793 = vadd.f32 %v783, %v791
        %v794 = vtanh.pop %v793
        %796 = vrot.lane.b32.xlu0 %v794, 64
        %v797 = vpop.permute.xlu0 %796
        %v799 = vmul.f32 %v769, %v797
        %800 = vst.msk [vmem:[#allocation3] sm:$0xff] %vm353, %v793
        %v801 = vpack.c.bf16 %v799, %v799
        %803 = vrot.lane.b32.xlu0 %v801, 80
        %v804 = vpop.permute.xlu0 %803
        %806 = vst.msk [vmem:[#allocation2] sm:$0xf] %vm360, %v804
        %v807 = vpack.c.bf16 %v793, %v793
        %809 = vrot.lane.b32.xlu0 %v807, 48
        %v810 = vpop.permute.xlu0 %809
        %812 = vst.msk [vmem:[#allocation2] sm:$0xf] %vm367, %v810
        %s813 = sadd.s32 %s369, 4
        %p814 = scmp.ge.s32.totalorder %s813, 12
        // Predicated region
        $region53: #{tpu_custom_call.1} parent=27 // pred_check
          %p815 = pneg %p814
        $region54: #{tpu_custom_call.1} parent=27 // pred_check_branch
          %817 = sbr.rel (%p815) target = $region56
        $region55: #{tpu_custom_call.1} parent=27 // pred_region
          %s818 = sadd.s32 %s369, 4294967288
          %p819 = scmp.gt.s32.totalorder %s818, 0
          %s820 = scalar_select %p819, %s818, 0
          %822 = vrot.lane.b32.xlu0 %v799, 64
          %v823 = vpop.permute.xlu0 %822
          %s825 = smul.u32 %s820, 8
          %s826 = scalar_lea.vmem %s179, %s825 [#allocation7]
          %827 = vst.msk [vmem:[%s826] sm:$0xff] %vm353, %v823
        $region56: #{tpu_custom_call.1} parent=27 // pred_fallthru
          _
        %s828 = scalar_lea.vmem %s158, 40 [#allocation4]
        %v829 = vld [vmem:[%s828] sm:$0xff]
        %v830 = vpack.c.bf16 %v829, %v829
        %831 = vst.msk [vmem:[#allocation2] sm:$0xf] %vm211, %v830
        %v832 = vld [vmem:[#allocation2] sm:$0xf]
        %v834 = vsel %vm274, %v832, 0
        %836 = vmatpush.bf16.msra.mxu0 0
        %837 = vmatpush.bf16.msra.mxu0 0
        %838 = vmatpush.bf16.msra.mxu0 %v260
        %839 = vmatpush.bf16.msra.mxu0 %v258
        %840 = vmatpush.bf16.msra.mxu0 %v256
        %841 = vmatpush.bf16.msra.mxu0 %v254
        %842 = vmatpush.bf16.msra.mxu0 %v252
        %843 = vmatpush.bf16.msra.mxu0 %v250
        %844 = vmatmul.bf16.gmra.mxu0 %v834
        %v845 = vpop.f32.mrf.mxu0
        %v846 = vadd.f32 0.0, %v845
        %v847 = vpop.f32.mrf.mxu0
        %848 = vdwg.mxu0
        %849 = vmatpush.bf16.msra.mxu0 0
        %850 = vmatpush.bf16.msra.mxu0 0
        %851 = vmatpush.bf16.msra.mxu0 %v261
        %852 = vmatpush.bf16.msra.mxu0 %v259
        %853 = vmatpush.bf16.msra.mxu0 %v257
        %854 = vmatpush.bf16.msra.mxu0 %v255
        %855 = vmatpush.bf16.msra.mxu0 %v253
        %856 = vmatpush.bf16.msra.mxu0 %v251
        %857 = vmatmul.bf16.gmra.mxu0 %v834
        %v858 = vpop.f32.mrf.mxu0
        %v859 = vadd.f32 0.0, %v858
        %v860 = vpop.f32.mrf.mxu0
        %861 = vdwg.mxu0
        %v862 = vxor.u32 %v846, 2147483648
        %v863 = vmul.f32 %v862, 1.442695
        %v864 = vpow.pop %v863
        %v865 = vadd.f32 %v864, 1.0
        %v866 = vrcp.pop %v865
        %v867 = vmul.f32 %v865, %v866
        %v868 = vsub.f32 1.0, %v867
        %v869 = vmul.f32 %v866, %v868
        %v870 = vadd.f32 %v866, %v869
        %vm871 = vweird.f32 %v865
        %vm872 = vweird.f32 %v866
        %vm873 = vmor %vm871, %vm872
        %v874 = vsel %vm873, %v866, %v870
        %v875 = vand.u32 2147483647, %v865
        %vm876 = vcmp.eq.f32.partialorder %v875, 8.507059e+37
        %v877 = vand.u32 %v865, 2147483648
        %v878 = vor.u32 1.1754944e-38, %v877
        %v879 = vsel %vm876, %v878, %v874
        %v880 = vmul.f32 1.0, %v879
        %v881 = vtanh.pop %v846
        %v882 = vtanh.pop %v859
        %v883 = vld [vmem:[#allocation3] sm:$0xff]
        %v884 = vadd.f32 %v829, 1.0
        %v885 = vrcp.pop %v884
        %v886 = vsub.f32 %v883, %v882
        %888 = vset.pattern.permute.xlu0 16
        %889 = vperm.xlu0 %888, %v885
        %v890 = vpop.permute.xlu0 %889
        %v892 = vmul.f32 %v882, %v890
        %v893 = vadd.f32 %v886, %v892
        %v894 = vmul.f32 %v880, %v893
        %896 = vrot.lane.b32.xlu0 %v881, 64
        %v897 = vpop.permute.xlu0 %896
        %v899 = vmul.f32 %v880, %v897
        %901 = vrot.lane.b32.xlu0 %v899, 96
        %v902 = vpop.permute.xlu0 %901
        %v904 = vadd.f32 %v894, %v902
        %v905 = vtanh.pop %v904
        %907 = vrot.lane.b32.xlu0 %v905, 64
        %v908 = vpop.permute.xlu0 %907
        %v910 = vmul.f32 %v880, %v908
        %911 = vst.msk [vmem:[#allocation3] sm:$0xff] %vm353, %v904
        %v912 = vpack.c.bf16 %v910, %v910
        %914 = vrot.lane.b32.xlu0 %v912, 80
        %v915 = vpop.permute.xlu0 %914
        %917 = vst.msk [vmem:[#allocation2] sm:$0xf] %vm360, %v915
        %v918 = vpack.c.bf16 %v904, %v904
        %920 = vrot.lane.b32.xlu0 %v918, 48
        %v921 = vpop.permute.xlu0 %920
        %923 = vst.msk [vmem:[#allocation2] sm:$0xf] %vm367, %v921
        %s924 = sadd.s32 %s369, 5
        %p925 = scmp.ge.s32.totalorder %s924, 12
        // Predicated region
        $region57: #{tpu_custom_call.1} parent=27 // pred_check
          %p926 = pneg %p925
        $region58: #{tpu_custom_call.1} parent=27 // pred_check_branch
          %928 = sbr.rel (%p926) target = $region60
        $region59: #{tpu_custom_call.1} parent=27 // pred_region
          %s929 = sadd.s32 %s369, 4294967289
          %p930 = scmp.gt.s32.totalorder %s929, 0
          %s931 = scalar_select %p930, %s929, 0
          %933 = vrot.lane.b32.xlu0 %v910, 64
          %v934 = vpop.permute.xlu0 %933
          %s936 = smul.u32 %s931, 8
          %s937 = scalar_lea.vmem %s179, %s936 [#allocation7]
          %938 = vst.msk [vmem:[%s937] sm:$0xff] %vm353, %v934
        $region60: #{tpu_custom_call.1} parent=27 // pred_fallthru
          _
        %s939 = scalar_lea.vmem %s158, 48 [#allocation4]
        %v940 = vld [vmem:[%s939] sm:$0xff]
        %v941 = vpack.c.bf16 %v940, %v940
        %942 = vst.msk [vmem:[#allocation2] sm:$0xf] %vm211, %v941
        %v943 = vld [vmem:[#allocation2] sm:$0xf]
        %v945 = vsel %vm274, %v943, 0
        %947 = vmatpush.bf16.msra.mxu0 0
        %948 = vmatpush.bf16.msra.mxu0 0
        %949 = vmatpush.bf16.msra.mxu0 %v260
        %950 = vmatpush.bf16.msra.mxu0 %v258
        %951 = vmatpush.bf16.msra.mxu0 %v256
        %952 = vmatpush.bf16.msra.mxu0 %v254
        %953 = vmatpush.bf16.msra.mxu0 %v252
        %954 = vmatpush.bf16.msra.mxu0 %v250
        %955 = vmatmul.bf16.gmra.mxu0 %v945
        %v956 = vpop.f32.mrf.mxu0
        %v957 = vadd.f32 0.0, %v956
        %v958 = vpop.f32.mrf.mxu0
        %959 = vdwg.mxu0
        %960 = vmatpush.bf16.msra.mxu0 0
        %961 = vmatpush.bf16.msra.mxu0 0
        %962 = vmatpush.bf16.msra.mxu0 %v261
        %963 = vmatpush.bf16.msra.mxu0 %v259
        %964 = vmatpush.bf16.msra.mxu0 %v257
        %965 = vmatpush.bf16.msra.mxu0 %v255
        %966 = vmatpush.bf16.msra.mxu0 %v253
        %967 = vmatpush.bf16.msra.mxu0 %v251
        %968 = vmatmul.bf16.gmra.mxu0 %v945
        %v969 = vpop.f32.mrf.mxu0
        %v970 = vadd.f32 0.0, %v969
        %v971 = vpop.f32.mrf.mxu0
        %972 = vdwg.mxu0
        %v973 = vxor.u32 %v957, 2147483648
        %v974 = vmul.f32 %v973, 1.442695
        %v975 = vpow.pop %v974
        %v976 = vadd.f32 %v975, 1.0
        %v977 = vrcp.pop %v976
        %v978 = vmul.f32 %v976, %v977
        %v979 = vsub.f32 1.0, %v978
        %v980 = vmul.f32 %v977, %v979
        %v981 = vadd.f32 %v977, %v980
        %vm982 = vweird.f32 %v976
        %vm983 = vweird.f32 %v977
        %vm984 = vmor %vm982, %vm983
        %v985 = vsel %vm984, %v977, %v981
        %v986 = vand.u32 2147483647, %v976
        %vm987 = vcmp.eq.f32.partialorder %v986, 8.507059e+37
        %v988 = vand.u32 %v976, 2147483648
        %v989 = vor.u32 1.1754944e-38, %v988
        %v990 = vsel %vm987, %v989, %v985
        %v991 = vmul.f32 1.0, %v990
        %v992 = vtanh.pop %v957
        %v993 = vtanh.pop %v970
        %v994 = vld [vmem:[#allocation3] sm:$0xff]
        %v995 = vadd.f32 %v940, 1.0
        %v996 = vrcp.pop %v995
        %v997 = vsub.f32 %v994, %v993
        %999 = vset.pattern.permute.xlu0 16
        %1000 = vperm.xlu0 %999, %v996
        %v1001 = vpop.permute.xlu0 %1000
        %v1003 = vmul.f32 %v993, %v1001
        %v1004 = vadd.f32 %v997, %v1003
        %v1005 = vmul.f32 %v991, %v1004
        %1007 = vrot.lane.b32.xlu0 %v992, 64
        %v1008 = vpop.permute.xlu0 %1007
        %v1010 = vmul.f32 %v991, %v1008
        %1012 = vrot.lane.b32.xlu0 %v1010, 96
        %v1013 = vpop.permute.xlu0 %1012
        %v1015 = vadd.f32 %v1005, %v1013
        %v1016 = vtanh.pop %v1015
        %1018 = vrot.lane.b32.xlu0 %v1016, 64
        %v1019 = vpop.permute.xlu0 %1018
        %v1021 = vmul.f32 %v991, %v1019
        %1022 = vst.msk [vmem:[#allocation3] sm:$0xff] %vm353, %v1015
        %v1023 = vpack.c.bf16 %v1021, %v1021
        %1025 = vrot.lane.b32.xlu0 %v1023, 80
        %v1026 = vpop.permute.xlu0 %1025
        %1028 = vst.msk [vmem:[#allocation2] sm:$0xf] %vm360, %v1026
        %v1029 = vpack.c.bf16 %v1015, %v1015
        %1031 = vrot.lane.b32.xlu0 %v1029, 48
        %v1032 = vpop.permute.xlu0 %1031
        %1034 = vst.msk [vmem:[#allocation2] sm:$0xf] %vm367, %v1032
        %s1035 = sadd.s32 %s369, 6
        %p1036 = scmp.ge.s32.totalorder %s1035, 12
        // Predicated region
        $region61: #{tpu_custom_call.1} parent=27 // pred_check
          %p1037 = pneg %p1036
        $region62: #{tpu_custom_call.1} parent=27 // pred_check_branch
          %1039 = sbr.rel (%p1037) target = $region64
        $region63: #{tpu_custom_call.1} parent=27 // pred_region
          %s1040 = sadd.s32 %s369, 4294967290
          %p1041 = scmp.gt.s32.totalorder %s1040, 0
          %s1042 = scalar_select %p1041, %s1040, 0
          %1044 = vrot.lane.b32.xlu0 %v1021, 64
          %v1045 = vpop.permute.xlu0 %1044
          %s1047 = smul.u32 %s1042, 8
          %s1048 = scalar_lea.vmem %s179, %s1047 [#allocation7]
          %1049 = vst.msk [vmem:[%s1048] sm:$0xff] %vm353, %v1045
        $region64: #{tpu_custom_call.1} parent=27 // pred_fallthru
          _
        %s1050 = scalar_lea.vmem %s158, 56 [#allocation4]
        %v1051 = vld [vmem:[%s1050] sm:$0xff]
        %v1052 = vpack.c.bf16 %v1051, %v1051
        %1053 = vst.msk [vmem:[#allocation2] sm:$0xf] %vm211, %v1052
        %v1054 = vld [vmem:[#allocation2] sm:$0xf]
        %v1056 = vsel %vm274, %v1054, 0
        %1058 = vmatpush.bf16.msra.mxu0 0
        %1059 = vmatpush.bf16.msra.mxu0 0
        %1060 = vmatpush.bf16.msra.mxu0 %v260
        %1061 = vmatpush.bf16.msra.mxu0 %v258
        %1062 = vmatpush.bf16.msra.mxu0 %v256
        %1063 = vmatpush.bf16.msra.mxu0 %v254
        %1064 = vmatpush.bf16.msra.mxu0 %v252
        %1065 = vmatpush.bf16.msra.mxu0 %v250
        %1066 = vmatmul.bf16.gmra.mxu0 %v1056
        %v1067 = vpop.f32.mrf.mxu0
        %v1068 = vadd.f32 0.0, %v1067
        %v1069 = vpop.f32.mrf.mxu0
        %1070 = vdwg.mxu0
        %1071 = vmatpush.bf16.msra.mxu0 0
        %1072 = vmatpush.bf16.msra.mxu0 0
        %1073 = vmatpush.bf16.msra.mxu0 %v261
        %1074 = vmatpush.bf16.msra.mxu0 %v259
        %1075 = vmatpush.bf16.msra.mxu0 %v257
        %1076 = vmatpush.bf16.msra.mxu0 %v255
        %1077 = vmatpush.bf16.msra.mxu0 %v253
        %1078 = vmatpush.bf16.msra.mxu0 %v251
        %1079 = vmatmul.bf16.gmra.mxu0 %v1056
        %v1080 = vpop.f32.mrf.mxu0
        %v1081 = vadd.f32 0.0, %v1080
        %v1082 = vpop.f32.mrf.mxu0
        %1083 = vdwg.mxu0
        %v1084 = vxor.u32 %v1068, 2147483648
        %v1085 = vmul.f32 %v1084, 1.442695
        %v1086 = vpow.pop %v1085
        %v1087 = vadd.f32 %v1086, 1.0
        %v1088 = vrcp.pop %v1087
        %v1089 = vmul.f32 %v1087, %v1088
        %v1090 = vsub.f32 1.0, %v1089
        %v1091 = vmul.f32 %v1088, %v1090
        %v1092 = vadd.f32 %v1088, %v1091
        %vm1093 = vweird.f32 %v1087
        %vm1094 = vweird.f32 %v1088
        %vm1095 = vmor %vm1093, %vm1094
        %v1096 = vsel %vm1095, %v1088, %v1092
        %v1097 = vand.u32 2147483647, %v1087
        %vm1098 = vcmp.eq.f32.partialorder %v1097, 8.507059e+37
        %v1099 = vand.u32 %v1087, 2147483648
        %v1100 = vor.u32 1.1754944e-38, %v1099
        %v1101 = vsel %vm1098, %v1100, %v1096
        %v1102 = vmul.f32 1.0, %v1101
        %v1103 = vtanh.pop %v1068
        %v1104 = vtanh.pop %v1081
        %v1105 = vld [vmem:[#allocation3] sm:$0xff]
        %v1106 = vadd.f32 %v1051, 1.0
        %v1107 = vrcp.pop %v1106
        %v1108 = vsub.f32 %v1105, %v1104
        %1110 = vset.pattern.permute.xlu0 16
        %1111 = vperm.xlu0 %1110, %v1107
        %v1112 = vpop.permute.xlu0 %1111
        %v1114 = vmul.f32 %v1104, %v1112
        %v1115 = vadd.f32 %v1108, %v1114
        %v1116 = vmul.f32 %v1102, %v1115
        %1118 = vrot.lane.b32.xlu0 %v1103, 64
        %v1119 = vpop.permute.xlu0 %1118
        %v1121 = vmul.f32 %v1102, %v1119
        %1123 = vrot.lane.b32.xlu0 %v1121, 96
        %v1124 = vpop.permute.xlu0 %1123
        %v1126 = vadd.f32 %v1116, %v1124
        %v1127 = vtanh.pop %v1126
        %1129 = vrot.lane.b32.xlu0 %v1127, 64
        %v1130 = vpop.permute.xlu0 %1129
        %v1132 = vmul.f32 %v1102, %v1130
        %1133 = vst.msk [vmem:[#allocation3] sm:$0xff] %vm353, %v1126
        %v1134 = vpack.c.bf16 %v1132, %v1132
        %1136 = vrot.lane.b32.xlu0 %v1134, 80
        %v1137 = vpop.permute.xlu0 %1136
        %1139 = vst.msk [vmem:[#allocation2] sm:$0xf] %vm360, %v1137
        %v1140 = vpack.c.bf16 %v1126, %v1126
        %1142 = vrot.lane.b32.xlu0 %v1140, 48
        %v1143 = vpop.permute.xlu0 %1142
        %1145 = vst.msk [vmem:[#allocation2] sm:$0xf] %vm367, %v1143
        %s1146 = sadd.s32 %s369, 7
        %p1147 = scmp.ge.s32.totalorder %s1146, 12
        // Predicated region
        $region65: #{tpu_custom_call.1} parent=27 // pred_check
          %p1148 = pneg %p1147
        $region66: #{tpu_custom_call.1} parent=27 // pred_check_branch
          %1150 = sbr.rel (%p1148) target = $region68
        $region67: #{tpu_custom_call.1} parent=27 // pred_region
          %s1151 = sadd.s32 %s369, 4294967291
          %p1152 = scmp.gt.s32.totalorder %s1151, 0
          %s1153 = scalar_select %p1152, %s1151, 0
          %1155 = vrot.lane.b32.xlu0 %v1132, 64
          %v1156 = vpop.permute.xlu0 %1155
          %s1158 = smul.u32 %s1153, 8
          %s1159 = scalar_lea.vmem %s179, %s1158 [#allocation7]
          %1160 = vst.msk [vmem:[%s1159] sm:$0xff] %vm353, %v1156
        $region68: #{tpu_custom_call.1} parent=27 // pred_fallthru
          _
        %s1161 = sand.u32 %s88, 1
        %s1162 = scalar_lea.sflag [#allocation6], %s1161
        %s1163 = sand.u32 %s88, 1
        %s1164 = smul.addr %s1163, 32
        %s1165 = scalar_lea.vmem [#allocation7], %s1164
        // Predicated region
        $region69: #{tpu_custom_call.1} parent=27 // pred_check
          %p1166 = pneg %p98
        $region70: #{tpu_custom_call.1} parent=27 // pred_check_branch
          %1168 = sbr.rel (%p1166) target = $region72
        $region71: #{tpu_custom_call.1} parent=27 // pred_region
          %1170 = vsyncadd %s1162, 0
          %s1171 = smul.addr %s23, 8
          %s1172 = scalar_lea.hbm %s2, %s1171
          %s1173 = sshll.u32 %s1165, 4
          %s1174 = int_to_ptr.vmem [resolvable:$true] %s1173
          %s1175 = sshll.u32 %s1172, 4
          %s1176 = int_to_ptr.hbm [resolvable:$true] %s1175
          %1181 = dma.vmem_to_hbm [thread:$0]  %s1174, 512, %s1176, %s1162, 128, 256, 8
        $region72: #{tpu_custom_call.1} parent=27 // pred_fallthru
          _
      $region28: #{tpu_custom_call.1} parent=5 // pred_fallthru
        _
      %p1182 = scmp.le.s32.totalorder 2, %s14
      // Predicated region
      $region73: #{tpu_custom_call.1} parent=5 // pred_check
        %p1183 = pneg %p1182
      $region74: #{tpu_custom_call.1} parent=5 // pred_check_branch
        %1185 = sbr.rel (%p1183) target = $region76
      $region75: #{tpu_custom_call.1} parent=5 // pred_region
        %s1186 = ssub.s32 %s14, 2
        // Predicated region
        $region77: #{tpu_custom_call.1} parent=75 // pred_check
          %p1187 = pneg %p104
        $region78: #{tpu_custom_call.1} parent=75 // pred_check_branch
          %1189 = sbr.rel (%p1187) target = $region80
        $region79: #{tpu_custom_call.1} parent=75 // pred_region
          %s1190 = sand.u32 %s89, 1
          %s1191 = scalar_lea.sflag [#allocation6], %s1190
          %s1192 = sand.u32 %s89, 1
          %s1193 = smul.addr %s1192, 32
          %s1194 = scalar_lea.vmem [#allocation7], %s1193
          %1196 = dma.done %s1191, 512
        $region80: #{tpu_custom_call.1} parent=75 // pred_fallthru
          _
      $region76: #{tpu_custom_call.1} parent=5 // pred_fallthru
        _
    $region6: #{tpu_custom_call.1} parent=1 // loop_footer
      %s18 = sadd.s32 1, %s14
    $region7: #{tpu_custom_call.1} parent=1 // loop_footer_branch
      %13 = sbr.rel target = $region3
    $region8: #{tpu_custom_call.1} parent=1 // loop_exit
      _
    %1197 = vsyncpa [#allocation5], 1
    %s1198 = scalar_lea.sflag [#allocation5], 1
    %1199 = vsyncpa %s1198, 1
    %1200 = vsyncpa [#allocation6], 1
    %s1201 = scalar_lea.sflag [#allocation6], 1
    %1202 = vsyncpa %s1201, 1

</llo_original>
